<compile_context>
chip_gen: v6e
topology: v6e:2x2x1
jax: 0.10.0
libtpu: 0.0.40
codegen_flags: <defaults>
</compile_context>

<pallas_src>
import jax
import jax.numpy as jnp
from jax.experimental import pallas as pl
from jax.experimental.pallas import tpu as pltpu


def _round_up(x, m):
    return (x + m - 1) // m * m


def _shift_lanes(x, k):
    """result[..., i] = x[..., (i - k) mod n]  (== jnp.roll(x, k, axis=-1)).

    Implemented with static slices + one lane concat so the semantics are
    pinned by the JAX slicing spec; k is a static Python int.
    """
    n = x.shape[-1]
    k = k % n
    if k == 0:
        return x
    return jnp.concatenate([x[..., n - k:], x[..., :n - k]], axis=-1)


def _riffle_segments(x, half):
    """In-register column interleave for the r=2 pixel shuffle.

    The last axis of `x` is a multiple of 2*half.  Every aligned segment of
    width 2*half holds [A | B] (each `half` wide) and is rewritten in place to
    the element-wise interleave [A0, B0, A1, B1, ...].  `half` must be a power
    of two.  Uses log2(half) stages of block swaps (2 lane shifts + 2 selects
    per stage); wraparound lanes are never selected, so the shifts are safe.
    """
    if half <= 1:
        return x
    n = x.shape[-1]
    pos = jax.lax.broadcasted_iota(
        jnp.int32, (1,) * (x.ndim - 1) + (n,), x.ndim - 1)
    s = half // 2
    while s >= 1:
        r = pos & (4 * s - 1)                    # position within its 4s-wide group
        take_right = (r >= s) & (r < 2 * s)      # wants the value s lanes to the right
        take_left = (r >= 2 * s) & (r < 3 * s)   # wants the value s lanes to the left
        x = jnp.where(take_right, _shift_lanes(x, -s),
                      jnp.where(take_left, _shift_lanes(x, s), x))
        s //= 2
    return x


def dinv_kernel(xu_ref, xsk_ref, s_ref, u_ref, w_ref, b_ref, out_ref):
    # xu_ref : (1, N,  R, W)     xsk_ref: (1, 2N, R, W)
    # s_ref  : (1, 2N, 1, 1)     u_ref  : (1, 2N, 1, 1)
    # w_ref  : (N, 2N, 1, 1)     b_ref  : (1, 2N, 1, 1)
    # out_ref: (1, N,  R, 4W)  lane x = i*2W + 2w + j holds cat-channel
    #                          4co + 2i + j, i.e. output pixel (2h+i, 2w+j).
    _, N, R, W = xu_ref.shape
    N2 = xsk_ref.shape[1]

    xu = xu_ref[...].astype(jnp.float32)      # (1, N,  R, W)
    xsk = xsk_ref[...].astype(jnp.float32)    # (1, 2N, R, W)
    s = s_ref[...].astype(jnp.float32)        # (1, 2N, 1, 1)
    u = u_ref[...].astype(jnp.float32)
    w = w_ref[...].astype(jnp.float32)        # (N, 2N, 1, 1)  -- cast hoisted
    b = b_ref[...].astype(jnp.float32)        # (1, 2N, 1, 1)

    # 1x1 conv (+ identity skip): K = N is tiny -> unrolled VPU broadcast-FMAs.
    # The conv bias is folded into the skip add (single hoisted broadcast).
    acc = xsk + b
    for c in range(N):
        acc = acc + w[c][None] * xu[:, c:c + 1]
    xu_new = acc                              # (1, 2N, R, W): conv(xu) + xsk
    xsk_new = xsk * s + u                     # (1, 2N, R, W)

    # Fused torch.cat + pixel_shuffle(2): cat channel ch is xu_new for ch < 2N
    # and xsk_new for ch >= 2N; output channel co takes cat channels
    # 4co..4co+3, laid out along lanes as [4co | 4co+1 | 4co+2 | 4co+3] and
    # then each 2W half is column-riffled in-register.
    def cat_ch(ch):
        return xu_new[:, ch] if ch < N2 else xsk_new[:, ch - N2]   # (1, R, W)

    planes = [
        jnp.concatenate([cat_ch(4 * co + k) for k in range(4)], axis=-1)
        for co in range(N)
    ]                                         # each (1, R, 4W)
    pre = jnp.stack(planes, axis=1)           # (1, N, R, 4W)
    out_ref[...] = _riffle_segments(pre, W).astype(out_ref.dtype)


def _pick_row_tile(H, W, N, itemsize, budget_bytes):
    """Rows per grid step: a multiple of 8 dividing H (or H itself), as large
    as possible under a per-step single-buffer VMEM budget, preferring >= 2
    row blocks so both v7x TensorCores get work even when B == 1."""
    w_in = _round_up(W, 128)
    w_out = _round_up(4 * W, 128)

    def step_bytes(r):
        rp = _round_up(r, 8)
        return (3 * N * rp * w_in + N * rp * w_out) * itemsize

    cands = [r for r in range(8, H + 1, 8) if H % r == 0] or [H]
    pref = [r for r in cands if H // r >= 2] or cands
    fit = [r for r in pref if step_bytes(r) <= budget_bytes] or [min(pref)]
    return max(fit)


def pixel_shuffle(x, r):
    # torch.pixel_shuffle semantics, NCHW (used only by the pure-JAX reference
    # and the non-power-of-two-width fallback).
    B, C, H, W = x.shape
    co = C // (r * r)
    x = x.reshape(B, co, r, r, H, W)
    x = x.transpose(0, 1, 4, 2, 5, 3)
    return x.reshape(B, co, H * r, W * r)


def dinv_block_reference(xu, xsk, u, s, w, b):
    """Pure-JAX reference matching the PyTorch module exactly."""
    B, N, H, W = xu.shape
    N2 = 2 * N
    conv = jnp.einsum('oc,bchw->bohw', w.reshape(N2, N), xu) + b.reshape(1, N2, 1, 1)
    return pixel_shuffle(jnp.concatenate([conv + xsk, xsk * s + u], axis=1), 2)


def dinv_block_forward(xu, xsk, u, s, w, b, *, budget_bytes=8 * 1024 * 1024):
    """xu: (B,N,H,W)  xsk: (B,2N,H,W)  u,s: (B,2N,1,1)
       w: (2N,N,1,1) conv weight  b: (2N,) conv bias   ->  (B, N, 2H, 2W)."""
    B, N, H, W = xu.shape
    N2 = 2 * N

    if W <= 0 or (W & (W - 1)) != 0:
        # TODO(synk): the in-register column riffle needs a power-of-two W;
        # other widths fall back to the (two-pass) XLA reference.
        return dinv_block_reference(xu, xsk, u, s, w, b)

    itemsize = jnp.dtype(xu.dtype).itemsize
    R = _pick_row_tile(H, W, N, itemsize, budget_bytes)
    n_rb = H // R

    w_f = jnp.transpose(w.reshape(N2, N), (1, 0)).reshape(N, N2, 1, 1)  # w_f[c,o]=w[o,c]
    b_f = b.reshape(1, N2, 1, 1)

    cost = pl.CostEstimate(
        flops=2 * B * H * W * N * N2 + 3 * B * N2 * H * W,
        transcendentals=0,
        bytes_accessed=itemsize * B * H * W * 7 * N,   # read 3N, write 4N channels
    )

    out = pl.pallas_call(
        dinv_kernel,
        out_shape=jax.ShapeDtypeStruct((B, N, H, 4 * W), xu.dtype),
        grid=(B, n_rb),
        in_specs=[
            pl.BlockSpec((1, N, R, W), lambda bi, ri: (bi, 0, ri, 0)),
            pl.BlockSpec((1, N2, R, W), lambda bi, ri: (bi, 0, ri, 0)),
            pl.BlockSpec((1, N2, 1, 1), lambda bi, ri: (bi, 0, 0, 0)),
            pl.BlockSpec((1, N2, 1, 1), lambda bi, ri: (bi, 0, 0, 0)),
            pl.BlockSpec((N, N2, 1, 1), lambda bi, ri: (0, 0, 0, 0)),
            pl.BlockSpec((1, N2, 1, 1), lambda bi, ri: (0, 0, 0, 0)),
        ],
        out_specs=pl.BlockSpec((1, N, R, 4 * W), lambda bi, ri: (bi, 0, ri, 0)),
        compiler_params=pltpu.CompilerParams(
            dimension_semantics=("parallel", "parallel"),
            vmem_limit_bytes=48 * 1024 * 1024,
        ),
        cost_estimate=cost,
    )(xu, xsk, s, u, w_f, b_f)

    # (B, N, H, 4W) -> (B, N, 2H, 2W) is a pure row-major view: no extra pass.
    return out.reshape(B, N, 2 * H, 2 * W)


if __name__ == "__main__":
    # Module config: DInvBlock(channel_num=4, channel_split_num=2)
    channel_num = 4
    B, H, W = 2, 16, 16
    N, N2 = channel_num, 2 * channel_num

    key = jax.random.PRNGKey(0)
    k_xu, k_xsk, k_u, k_s, k_w, k_b = jax.random.split(key, 6)

    xu = jax.random.normal(k_xu, (B, N, H, W), dtype=jnp.float32)
    xsk = jax.random.normal(k_xsk, (B, N2, H, W), dtype=jnp.float32)
    u = jax.random.normal(k_u, (B, N2, 1, 1), dtype=jnp.float32)
    s = jax.random.normal(k_s, (B, N2, 1, 1), dtype=jnp.float32)

    # Conv2d(N, 2N, kernel=1) parameters, deterministic init
    w = 0.1 * jax.random.normal(k_w, (N2, N, 1, 1), dtype=jnp.float32)
    b = 0.1 * jax.random.normal(k_b, (N2,), dtype=jnp.float32)

    fwd = jax.jit(dinv_block_forward)
    out = jax.block_until_ready(fwd(xu, xsk, u, s, w, b))

    ref = dinv_block_reference(xu, xsk, u, s, w, b)
    assert out.shape == (B, N, 2 * H, 2 * W), out.shape
    assert jnp.allclose(out, ref, atol=1e-5, rtol=1e-5), "mismatch vs reference"

    print("KERNEL_OK")
</pallas_src>

<mosaic_0001>
module attributes {stable_mosaic.version = 11 : i64} {
  func.func @dinv_kernel(%arg0: i32, %arg1: i32, %arg2: memref<1x4x8x16xf32, #tpu.memory_space<vmem>>, %arg3: memref<1x8x8x16xf32, #tpu.memory_space<vmem>>, %arg4: memref<1x8x1x1xf32, #tpu.memory_space<vmem>>, %arg5: memref<1x8x1x1xf32, #tpu.memory_space<vmem>>, %arg6: memref<4x8x1x1xf32, #tpu.memory_space<vmem>>, %arg7: memref<1x8x1x1xf32, #tpu.memory_space<vmem>>, %arg8: memref<1x4x8x64xf32, #tpu.memory_space<vmem>>) attributes {dimension_semantics = [#tpu.dimension_semantics<parallel>, #tpu.dimension_semantics<parallel>], iteration_bounds = array<i64: 2, 2>, scalar_prefetch = 0 : i64, scratch_operands = 0 : i64, tpu.core_type = #tpu.core_type<tc>, window_params = [{transform_indices = @transform_0, window_bounds = array<i64: 1, 4, 8, 16>}, {transform_indices = @transform_1, window_bounds = array<i64: 1, 8, 8, 16>}, {transform_indices = @transform_2, window_bounds = array<i64: 1, 8, 1, 1>}, {transform_indices = @transform_3, window_bounds = array<i64: 1, 8, 1, 1>}, {pipeline_mode = #tpu.pipeline_mode<synchronous>, transform_indices = @transform_4, window_bounds = array<i64: 4, 8, 1, 1>}, {pipeline_mode = #tpu.pipeline_mode<synchronous>, transform_indices = @transform_5, window_bounds = array<i64: 1, 8, 1, 1>}, {transform_indices = @transform_6, window_bounds = array<i64: 1, 4, 8, 64>}]} {
    %c0 = arith.constant 0 : index
    %c0_0 = arith.constant 0 : index
    %c0_1 = arith.constant 0 : index
    %c0_2 = arith.constant 0 : index
    %0 = vector.load %arg2[%c0, %c0_0, %c0_1, %c0_2] : memref<1x4x8x16xf32, #tpu.memory_space<vmem>>, vector<1x4x8x16xf32>
    %c0_3 = arith.constant 0 : index
    %c0_4 = arith.constant 0 : index
    %c0_5 = arith.constant 0 : index
    %c0_6 = arith.constant 0 : index
    %1 = vector.load %arg3[%c0_3, %c0_4, %c0_5, %c0_6] : memref<1x8x8x16xf32, #tpu.memory_space<vmem>>, vector<1x8x8x16xf32>
    %c0_7 = arith.constant 0 : index
    %c0_8 = arith.constant 0 : index
    %c0_9 = arith.constant 0 : index
    %c0_10 = arith.constant 0 : index
    %2 = vector.load %arg4[%c0_7, %c0_8, %c0_9, %c0_10] : memref<1x8x1x1xf32, #tpu.memory_space<vmem>>, vector<1x8x1x1xf32>
    %c0_11 = arith.constant 0 : index
    %c0_12 = arith.constant 0 : index
    %c0_13 = arith.constant 0 : index
    %c0_14 = arith.constant 0 : index
    %3 = vector.load %arg5[%c0_11, %c0_12, %c0_13, %c0_14] : memref<1x8x1x1xf32, #tpu.memory_space<vmem>>, vector<1x8x1x1xf32>
    %c0_15 = arith.constant 0 : index
    %c0_16 = arith.constant 0 : index
    %c0_17 = arith.constant 0 : index
    %c0_18 = arith.constant 0 : index
    %4 = vector.load %arg6[%c0_15, %c0_16, %c0_17, %c0_18] : memref<4x8x1x1xf32, #tpu.memory_space<vmem>>, vector<4x8x1x1xf32>
    %c0_19 = arith.constant 0 : index
    %c0_20 = arith.constant 0 : index
    %c0_21 = arith.constant 0 : index
    %c0_22 = arith.constant 0 : index
    %5 = vector.load %arg7[%c0_19, %c0_20, %c0_21, %c0_22] : memref<1x8x1x1xf32, #tpu.memory_space<vmem>>, vector<1x8x1x1xf32>
    %6 = vector.broadcast %5 : vector<1x8x1x1xf32> to vector<1x8x8x16xf32>
    %7 = arith.addf %1, %6 : vector<1x8x8x16xf32>
    %8 = vector.extract_strided_slice %4 {offsets = [0, 0, 0, 0], sizes = [1, 8, 1, 1], strides = [1, 1, 1, 1]} : vector<4x8x1x1xf32> to vector<1x8x1x1xf32>
    %9 = vector.shape_cast %8 : vector<1x8x1x1xf32> to vector<8x1x1xf32>
    %10 = vector.shape_cast %9 : vector<8x1x1xf32> to vector<1x8x1x1xf32>
    %11 = vector.extract_strided_slice %0 {offsets = [0, 0, 0, 0], sizes = [1, 1, 8, 16], strides = [1, 1, 1, 1]} : vector<1x4x8x16xf32> to vector<1x1x8x16xf32>
    %12 = vector.broadcast %10 : vector<1x8x1x1xf32> to vector<1x8x8x16xf32>
    %13 = vector.broadcast %11 : vector<1x1x8x16xf32> to vector<1x8x8x16xf32>
    %14 = arith.mulf %12, %13 : vector<1x8x8x16xf32>
    %15 = arith.addf %7, %14 : vector<1x8x8x16xf32>
    %16 = vector.extract_strided_slice %4 {offsets = [1, 0, 0, 0], sizes = [1, 8, 1, 1], strides = [1, 1, 1, 1]} : vector<4x8x1x1xf32> to vector<1x8x1x1xf32>
    %17 = vector.shape_cast %16 : vector<1x8x1x1xf32> to vector<8x1x1xf32>
    %18 = vector.shape_cast %17 : vector<8x1x1xf32> to vector<1x8x1x1xf32>
    %19 = vector.extract_strided_slice %0 {offsets = [0, 1, 0, 0], sizes = [1, 1, 8, 16], strides = [1, 1, 1, 1]} : vector<1x4x8x16xf32> to vector<1x1x8x16xf32>
    %20 = vector.broadcast %18 : vector<1x8x1x1xf32> to vector<1x8x8x16xf32>
    %21 = vector.broadcast %19 : vector<1x1x8x16xf32> to vector<1x8x8x16xf32>
    %22 = arith.mulf %20, %21 : vector<1x8x8x16xf32>
    %23 = arith.addf %15, %22 : vector<1x8x8x16xf32>
    %24 = vector.extract_strided_slice %4 {offsets = [2, 0, 0, 0], sizes = [1, 8, 1, 1], strides = [1, 1, 1, 1]} : vector<4x8x1x1xf32> to vector<1x8x1x1xf32>
    %25 = vector.shape_cast %24 : vector<1x8x1x1xf32> to vector<8x1x1xf32>
    %26 = vector.shape_cast %25 : vector<8x1x1xf32> to vector<1x8x1x1xf32>
    %27 = vector.extract_strided_slice %0 {offsets = [0, 2, 0, 0], sizes = [1, 1, 8, 16], strides = [1, 1, 1, 1]} : vector<1x4x8x16xf32> to vector<1x1x8x16xf32>
    %28 = vector.broadcast %26 : vector<1x8x1x1xf32> to vector<1x8x8x16xf32>
    %29 = vector.broadcast %27 : vector<1x1x8x16xf32> to vector<1x8x8x16xf32>
    %30 = arith.mulf %28, %29 : vector<1x8x8x16xf32>
    %31 = arith.addf %23, %30 : vector<1x8x8x16xf32>
    %32 = vector.extract_strided_slice %4 {offsets = [3, 0, 0, 0], sizes = [1, 8, 1, 1], strides = [1, 1, 1, 1]} : vector<4x8x1x1xf32> to vector<1x8x1x1xf32>
    %33 = vector.shape_cast %32 : vector<1x8x1x1xf32> to vector<8x1x1xf32>
    %34 = vector.shape_cast %33 : vector<8x1x1xf32> to vector<1x8x1x1xf32>
    %35 = vector.extract_strided_slice %0 {offsets = [0, 3, 0, 0], sizes = [1, 1, 8, 16], strides = [1, 1, 1, 1]} : vector<1x4x8x16xf32> to vector<1x1x8x16xf32>
    %36 = vector.broadcast %34 : vector<1x8x1x1xf32> to vector<1x8x8x16xf32>
    %37 = vector.broadcast %35 : vector<1x1x8x16xf32> to vector<1x8x8x16xf32>
    %38 = arith.mulf %36, %37 : vector<1x8x8x16xf32>
    %39 = arith.addf %31, %38 : vector<1x8x8x16xf32>
    %40 = vector.broadcast %2 : vector<1x8x1x1xf32> to vector<1x8x8x16xf32>
    %41 = arith.mulf %1, %40 : vector<1x8x8x16xf32>
    %42 = vector.broadcast %3 : vector<1x8x1x1xf32> to vector<1x8x8x16xf32>
    %43 = arith.addf %41, %42 : vector<1x8x8x16xf32>
    %44 = vector.extract_strided_slice %39 {offsets = [0, 0, 0, 0], sizes = [1, 1, 8, 16], strides = [1, 1, 1, 1]} : vector<1x8x8x16xf32> to vector<1x1x8x16xf32>
    %45 = vector.shape_cast %44 : vector<1x1x8x16xf32> to vector<1x8x16xf32>
    %46 = vector.extract_strided_slice %39 {offsets = [0, 1, 0, 0], sizes = [1, 1, 8, 16], strides = [1, 1, 1, 1]} : vector<1x8x8x16xf32> to vector<1x1x8x16xf32>
    %47 = vector.shape_cast %46 : vector<1x1x8x16xf32> to vector<1x8x16xf32>
    %48 = vector.extract_strided_slice %39 {offsets = [0, 2, 0, 0], sizes = [1, 1, 8, 16], strides = [1, 1, 1, 1]} : vector<1x8x8x16xf32> to vector<1x1x8x16xf32>
    %49 = vector.shape_cast %48 : vector<1x1x8x16xf32> to vector<1x8x16xf32>
    %50 = vector.extract_strided_slice %39 {offsets = [0, 3, 0, 0], sizes = [1, 1, 8, 16], strides = [1, 1, 1, 1]} : vector<1x8x8x16xf32> to vector<1x1x8x16xf32>
    %51 = vector.shape_cast %50 : vector<1x1x8x16xf32> to vector<1x8x16xf32>
    %52 = tpu.concatenate %45, %47, %49, %51 in 2 : vector<1x8x16xf32>, vector<1x8x16xf32>, vector<1x8x16xf32>, vector<1x8x16xf32> -> vector<1x8x64xf32>
    %53 = vector.extract_strided_slice %39 {offsets = [0, 4, 0, 0], sizes = [1, 1, 8, 16], strides = [1, 1, 1, 1]} : vector<1x8x8x16xf32> to vector<1x1x8x16xf32>
    %54 = vector.shape_cast %53 : vector<1x1x8x16xf32> to vector<1x8x16xf32>
    %55 = vector.extract_strided_slice %39 {offsets = [0, 5, 0, 0], sizes = [1, 1, 8, 16], strides = [1, 1, 1, 1]} : vector<1x8x8x16xf32> to vector<1x1x8x16xf32>
    %56 = vector.shape_cast %55 : vector<1x1x8x16xf32> to vector<1x8x16xf32>
    %57 = vector.extract_strided_slice %39 {offsets = [0, 6, 0, 0], sizes = [1, 1, 8, 16], strides = [1, 1, 1, 1]} : vector<1x8x8x16xf32> to vector<1x1x8x16xf32>
    %58 = vector.shape_cast %57 : vector<1x1x8x16xf32> to vector<1x8x16xf32>
    %59 = vector.extract_strided_slice %39 {offsets = [0, 7, 0, 0], sizes = [1, 1, 8, 16], strides = [1, 1, 1, 1]} : vector<1x8x8x16xf32> to vector<1x1x8x16xf32>
    %60 = vector.shape_cast %59 : vector<1x1x8x16xf32> to vector<1x8x16xf32>
    %61 = tpu.concatenate %54, %56, %58, %60 in 2 : vector<1x8x16xf32>, vector<1x8x16xf32>, vector<1x8x16xf32>, vector<1x8x16xf32> -> vector<1x8x64xf32>
    %62 = vector.extract_strided_slice %43 {offsets = [0, 0, 0, 0], sizes = [1, 1, 8, 16], strides = [1, 1, 1, 1]} : vector<1x8x8x16xf32> to vector<1x1x8x16xf32>
    %63 = vector.shape_cast %62 : vector<1x1x8x16xf32> to vector<1x8x16xf32>
    %64 = vector.extract_strided_slice %43 {offsets = [0, 1, 0, 0], sizes = [1, 1, 8, 16], strides = [1, 1, 1, 1]} : vector<1x8x8x16xf32> to vector<1x1x8x16xf32>
    %65 = vector.shape_cast %64 : vector<1x1x8x16xf32> to vector<1x8x16xf32>
    %66 = vector.extract_strided_slice %43 {offsets = [0, 2, 0, 0], sizes = [1, 1, 8, 16], strides = [1, 1, 1, 1]} : vector<1x8x8x16xf32> to vector<1x1x8x16xf32>
    %67 = vector.shape_cast %66 : vector<1x1x8x16xf32> to vector<1x8x16xf32>
    %68 = vector.extract_strided_slice %43 {offsets = [0, 3, 0, 0], sizes = [1, 1, 8, 16], strides = [1, 1, 1, 1]} : vector<1x8x8x16xf32> to vector<1x1x8x16xf32>
    %69 = vector.shape_cast %68 : vector<1x1x8x16xf32> to vector<1x8x16xf32>
    %70 = tpu.concatenate %63, %65, %67, %69 in 2 : vector<1x8x16xf32>, vector<1x8x16xf32>, vector<1x8x16xf32>, vector<1x8x16xf32> -> vector<1x8x64xf32>
    %71 = vector.extract_strided_slice %43 {offsets = [0, 4, 0, 0], sizes = [1, 1, 8, 16], strides = [1, 1, 1, 1]} : vector<1x8x8x16xf32> to vector<1x1x8x16xf32>
    %72 = vector.shape_cast %71 : vector<1x1x8x16xf32> to vector<1x8x16xf32>
    %73 = vector.extract_strided_slice %43 {offsets = [0, 5, 0, 0], sizes = [1, 1, 8, 16], strides = [1, 1, 1, 1]} : vector<1x8x8x16xf32> to vector<1x1x8x16xf32>
    %74 = vector.shape_cast %73 : vector<1x1x8x16xf32> to vector<1x8x16xf32>
    %75 = vector.extract_strided_slice %43 {offsets = [0, 6, 0, 0], sizes = [1, 1, 8, 16], strides = [1, 1, 1, 1]} : vector<1x8x8x16xf32> to vector<1x1x8x16xf32>
    %76 = vector.shape_cast %75 : vector<1x1x8x16xf32> to vector<1x8x16xf32>
    %77 = vector.extract_strided_slice %43 {offsets = [0, 7, 0, 0], sizes = [1, 1, 8, 16], strides = [1, 1, 1, 1]} : vector<1x8x8x16xf32> to vector<1x1x8x16xf32>
    %78 = vector.shape_cast %77 : vector<1x1x8x16xf32> to vector<1x8x16xf32>
    %79 = tpu.concatenate %72, %74, %76, %78 in 2 : vector<1x8x16xf32>, vector<1x8x16xf32>, vector<1x8x16xf32>, vector<1x8x16xf32> -> vector<1x8x64xf32>
    %80 = vector.shape_cast %52 : vector<1x8x64xf32> to vector<1x1x8x64xf32>
    %81 = vector.shape_cast %61 : vector<1x8x64xf32> to vector<1x1x8x64xf32>
    %82 = vector.shape_cast %70 : vector<1x8x64xf32> to vector<1x1x8x64xf32>
    %83 = vector.shape_cast %79 : vector<1x8x64xf32> to vector<1x1x8x64xf32>
    %84 = tpu.concatenate %80, %81, %82, %83 in 1 : vector<1x1x8x64xf32>, vector<1x1x8x64xf32>, vector<1x1x8x64xf32>, vector<1x1x8x64xf32> -> vector<1x4x8x64xf32>
    %85 = tpu.iota {dimensions = array<i32: 3>} : vector<1x1x1x64xi32>
    %c31_i32 = arith.constant 31 : i32
    %86 = vector.broadcast %c31_i32 : i32 to vector<1x1x1x64xi32>
    %87 = arith.andi %85, %86 : vector<1x1x1x64xi32>
    %c8_i32 = arith.constant 8 : i32
    %88 = vector.broadcast %c8_i32 : i32 to vector<1x1x1x64xi32>
    %89 = arith.cmpi sge, %87, %88 : vector<1x1x1x64xi32>
    %c16_i32 = arith.constant 16 : i32
    %90 = vector.broadcast %c16_i32 : i32 to vector<1x1x1x64xi32>
    %91 = arith.cmpi slt, %87, %90 : vector<1x1x1x64xi32>
    %92 = arith.andi %89, %91 : vector<1x1x1x64xi1>
    %c16_i32_23 = arith.constant 16 : i32
    %93 = vector.broadcast %c16_i32_23 : i32 to vector<1x1x1x64xi32>
    %94 = arith.cmpi sge, %87, %93 : vector<1x1x1x64xi32>
    %c24_i32 = arith.constant 24 : i32
    %95 = vector.broadcast %c24_i32 : i32 to vector<1x1x1x64xi32>
    %96 = arith.cmpi slt, %87, %95 : vector<1x1x1x64xi32>
    %97 = arith.andi %94, %96 : vector<1x1x1x64xi1>
    %98 = vector.extract_strided_slice %84 {offsets = [0, 0, 0, 8], sizes = [1, 4, 8, 56], strides = [1, 1, 1, 1]} : vector<1x4x8x64xf32> to vector<1x4x8x56xf32>
    %99 = vector.extract_strided_slice %84 {offsets = [0, 0, 0, 0], sizes = [1, 4, 8, 8], strides = [1, 1, 1, 1]} : vector<1x4x8x64xf32> to vector<1x4x8x8xf32>
    %100 = tpu.concatenate %98, %99 in 3 : vector<1x4x8x56xf32>, vector<1x4x8x8xf32> -> vector<1x4x8x64xf32>
    %101 = vector.extract_strided_slice %84 {offsets = [0, 0, 0, 56], sizes = [1, 4, 8, 8], strides = [1, 1, 1, 1]} : vector<1x4x8x64xf32> to vector<1x4x8x8xf32>
    %102 = vector.extract_strided_slice %84 {offsets = [0, 0, 0, 0], sizes = [1, 4, 8, 56], strides = [1, 1, 1, 1]} : vector<1x4x8x64xf32> to vector<1x4x8x56xf32>
    %103 = tpu.concatenate %101, %102 in 3 : vector<1x4x8x8xf32>, vector<1x4x8x56xf32> -> vector<1x4x8x64xf32>
    %104 = vector.shape_cast %97 : vector<1x1x1x64xi1> to vector<1x1x1x64xi1>
    %105 = vector.broadcast %104 : vector<1x1x1x64xi1> to vector<1x4x8x64xi1>
    %106 = arith.select %105, %103, %84 : vector<1x4x8x64xi1>, vector<1x4x8x64xf32>
    %107 = vector.shape_cast %92 : vector<1x1x1x64xi1> to vector<1x1x1x64xi1>
    %108 = vector.broadcast %107 : vector<1x1x1x64xi1> to vector<1x4x8x64xi1>
    %109 = arith.select %108, %100, %106 : vector<1x4x8x64xi1>, vector<1x4x8x64xf32>
    %c15_i32 = arith.constant 15 : i32
    %110 = vector.broadcast %c15_i32 : i32 to vector<1x1x1x64xi32>
    %111 = arith.andi %85, %110 : vector<1x1x1x64xi32>
    %c4_i32 = arith.constant 4 : i32
    %112 = vector.broadcast %c4_i32 : i32 to vector<1x1x1x64xi32>
    %113 = arith.cmpi sge, %111, %112 : vector<1x1x1x64xi32>
    %c8_i32_24 = arith.constant 8 : i32
    %114 = vector.broadcast %c8_i32_24 : i32 to vector<1x1x1x64xi32>
    %115 = arith.cmpi slt, %111, %114 : vector<1x1x1x64xi32>
    %116 = arith.andi %113, %115 : vector<1x1x1x64xi1>
    %c8_i32_25 = arith.constant 8 : i32
    %117 = vector.broadcast %c8_i32_25 : i32 to vector<1x1x1x64xi32>
    %118 = arith.cmpi sge, %111, %117 : vector<1x1x1x64xi32>
    %c12_i32 = arith.constant 12 : i32
    %119 = vector.broadcast %c12_i32 : i32 to vector<1x1x1x64xi32>
    %120 = arith.cmpi slt, %111, %119 : vector<1x1x1x64xi32>
    %121 = arith.andi %118, %120 : vector<1x1x1x64xi1>
    %122 = vector.extract_strided_slice %109 {offsets = [0, 0, 0, 4], sizes = [1, 4, 8, 60], strides = [1, 1, 1, 1]} : vector<1x4x8x64xf32> to vector<1x4x8x60xf32>
    %123 = vector.extract_strided_slice %109 {offsets = [0, 0, 0, 0], sizes = [1, 4, 8, 4], strides = [1, 1, 1, 1]} : vector<1x4x8x64xf32> to vector<1x4x8x4xf32>
    %124 = tpu.concatenate %122, %123 in 3 : vector<1x4x8x60xf32>, vector<1x4x8x4xf32> -> vector<1x4x8x64xf32>
    %125 = vector.extract_strided_slice %109 {offsets = [0, 0, 0, 60], sizes = [1, 4, 8, 4], strides = [1, 1, 1, 1]} : vector<1x4x8x64xf32> to vector<1x4x8x4xf32>
    %126 = vector.extract_strided_slice %109 {offsets = [0, 0, 0, 0], sizes = [1, 4, 8, 60], strides = [1, 1, 1, 1]} : vector<1x4x8x64xf32> to vector<1x4x8x60xf32>
    %127 = tpu.concatenate %125, %126 in 3 : vector<1x4x8x4xf32>, vector<1x4x8x60xf32> -> vector<1x4x8x64xf32>
    %128 = vector.shape_cast %121 : vector<1x1x1x64xi1> to vector<1x1x1x64xi1>
    %129 = vector.broadcast %128 : vector<1x1x1x64xi1> to vector<1x4x8x64xi1>
    %130 = arith.select %129, %127, %109 : vector<1x4x8x64xi1>, vector<1x4x8x64xf32>
    %131 = vector.shape_cast %116 : vector<1x1x1x64xi1> to vector<1x1x1x64xi1>
    %132 = vector.broadcast %131 : vector<1x1x1x64xi1> to vector<1x4x8x64xi1>
    %133 = arith.select %132, %124, %130 : vector<1x4x8x64xi1>, vector<1x4x8x64xf32>
    %c7_i32 = arith.constant 7 : i32
    %134 = vector.broadcast %c7_i32 : i32 to vector<1x1x1x64xi32>
    %135 = arith.andi %85, %134 : vector<1x1x1x64xi32>
    %c2_i32 = arith.constant 2 : i32
    %136 = vector.broadcast %c2_i32 : i32 to vector<1x1x1x64xi32>
    %137 = arith.cmpi sge, %135, %136 : vector<1x1x1x64xi32>
    %c4_i32_26 = arith.constant 4 : i32
    %138 = vector.broadcast %c4_i32_26 : i32 to vector<1x1x1x64xi32>
    %139 = arith.cmpi slt, %135, %138 : vector<1x1x1x64xi32>
    %140 = arith.andi %137, %139 : vector<1x1x1x64xi1>
    %c4_i32_27 = arith.constant 4 : i32
    %141 = vector.broadcast %c4_i32_27 : i32 to vector<1x1x1x64xi32>
    %142 = arith.cmpi sge, %135, %141 : vector<1x1x1x64xi32>
    %c6_i32 = arith.constant 6 : i32
    %143 = vector.broadcast %c6_i32 : i32 to vector<1x1x1x64xi32>
    %144 = arith.cmpi slt, %135, %143 : vector<1x1x1x64xi32>
    %145 = arith.andi %142, %144 : vector<1x1x1x64xi1>
    %146 = vector.extract_strided_slice %133 {offsets = [0, 0, 0, 2], sizes = [1, 4, 8, 62], strides = [1, 1, 1, 1]} : vector<1x4x8x64xf32> to vector<1x4x8x62xf32>
    %147 = vector.extract_strided_slice %133 {offsets = [0, 0, 0, 0], sizes = [1, 4, 8, 2], strides = [1, 1, 1, 1]} : vector<1x4x8x64xf32> to vector<1x4x8x2xf32>
    %148 = tpu.concatenate %146, %147 in 3 : vector<1x4x8x62xf32>, vector<1x4x8x2xf32> -> vector<1x4x8x64xf32>
    %149 = vector.extract_strided_slice %133 {offsets = [0, 0, 0, 62], sizes = [1, 4, 8, 2], strides = [1, 1, 1, 1]} : vector<1x4x8x64xf32> to vector<1x4x8x2xf32>
    %150 = vector.extract_strided_slice %133 {offsets = [0, 0, 0, 0], sizes = [1, 4, 8, 62], strides = [1, 1, 1, 1]} : vector<1x4x8x64xf32> to vector<1x4x8x62xf32>
    %151 = tpu.concatenate %149, %150 in 3 : vector<1x4x8x2xf32>, vector<1x4x8x62xf32> -> vector<1x4x8x64xf32>
    %152 = vector.shape_cast %145 : vector<1x1x1x64xi1> to vector<1x1x1x64xi1>
    %153 = vector.broadcast %152 : vector<1x1x1x64xi1> to vector<1x4x8x64xi1>
    %154 = arith.select %153, %151, %133 : vector<1x4x8x64xi1>, vector<1x4x8x64xf32>
    %155 = vector.shape_cast %140 : vector<1x1x1x64xi1> to vector<1x1x1x64xi1>
    %156 = vector.broadcast %155 : vector<1x1x1x64xi1> to vector<1x4x8x64xi1>
    %157 = arith.select %156, %148, %154 : vector<1x4x8x64xi1>, vector<1x4x8x64xf32>
    %c3_i32 = arith.constant 3 : i32
    %158 = vector.broadcast %c3_i32 : i32 to vector<1x1x1x64xi32>
    %159 = arith.andi %85, %158 : vector<1x1x1x64xi32>
    %c1_i32 = arith.constant 1 : i32
    %160 = vector.broadcast %c1_i32 : i32 to vector<1x1x1x64xi32>
    %161 = arith.cmpi sge, %159, %160 : vector<1x1x1x64xi32>
    %c2_i32_28 = arith.constant 2 : i32
    %162 = vector.broadcast %c2_i32_28 : i32 to vector<1x1x1x64xi32>
    %163 = arith.cmpi slt, %159, %162 : vector<1x1x1x64xi32>
    %164 = arith.andi %161, %163 : vector<1x1x1x64xi1>
    %c2_i32_29 = arith.constant 2 : i32
    %165 = vector.broadcast %c2_i32_29 : i32 to vector<1x1x1x64xi32>
    %166 = arith.cmpi sge, %159, %165 : vector<1x1x1x64xi32>
    %c3_i32_30 = arith.constant 3 : i32
    %167 = vector.broadcast %c3_i32_30 : i32 to vector<1x1x1x64xi32>
    %168 = arith.cmpi slt, %159, %167 : vector<1x1x1x64xi32>
    %169 = arith.andi %166, %168 : vector<1x1x1x64xi1>
    %170 = vector.extract_strided_slice %157 {offsets = [0, 0, 0, 1], sizes = [1, 4, 8, 63], strides = [1, 1, 1, 1]} : vector<1x4x8x64xf32> to vector<1x4x8x63xf32>
    %171 = vector.extract_strided_slice %157 {offsets = [0, 0, 0, 0], sizes = [1, 4, 8, 1], strides = [1, 1, 1, 1]} : vector<1x4x8x64xf32> to vector<1x4x8x1xf32>
    %172 = tpu.concatenate %170, %171 in 3 : vector<1x4x8x63xf32>, vector<1x4x8x1xf32> -> vector<1x4x8x64xf32>
    %173 = vector.extract_strided_slice %157 {offsets = [0, 0, 0, 63], sizes = [1, 4, 8, 1], strides = [1, 1, 1, 1]} : vector<1x4x8x64xf32> to vector<1x4x8x1xf32>
    %174 = vector.extract_strided_slice %157 {offsets = [0, 0, 0, 0], sizes = [1, 4, 8, 63], strides = [1, 1, 1, 1]} : vector<1x4x8x64xf32> to vector<1x4x8x63xf32>
    %175 = tpu.concatenate %173, %174 in 3 : vector<1x4x8x1xf32>, vector<1x4x8x63xf32> -> vector<1x4x8x64xf32>
    %176 = vector.shape_cast %169 : vector<1x1x1x64xi1> to vector<1x1x1x64xi1>
    %177 = vector.broadcast %176 : vector<1x1x1x64xi1> to vector<1x4x8x64xi1>
    %178 = arith.select %177, %175, %157 : vector<1x4x8x64xi1>, vector<1x4x8x64xf32>
    %179 = vector.shape_cast %164 : vector<1x1x1x64xi1> to vector<1x1x1x64xi1>
    %180 = vector.broadcast %179 : vector<1x1x1x64xi1> to vector<1x4x8x64xi1>
    %181 = arith.select %180, %172, %178 : vector<1x4x8x64xi1>, vector<1x4x8x64xf32>
    %c0_31 = arith.constant 0 : index
    %c0_32 = arith.constant 0 : index
    %c0_33 = arith.constant 0 : index
    %c0_34 = arith.constant 0 : index
    %182 = vector.load %arg8[%c0_31, %c0_32, %c0_33, %c0_34] : memref<1x4x8x64xf32, #tpu.memory_space<vmem>>, vector<1x4x8x64xf32>
    tpu.vector_store %arg8[%c0_31, %c0_32, %c0_33, %c0_34], %181 {strides = array<i32>} : memref<1x4x8x64xf32, #tpu.memory_space<vmem>>, vector<1x4x8x64xf32>,
    return
  }
  func.func @transform_0(%arg0: i32, %arg1: i32) -> (i32, i32, i32, i32) {
    %c0_i32 = arith.constant 0 : i32
    %c0_i32_0 = arith.constant 0 : i32
    %c0_i32_1 = arith.constant 0 : i32
    return %arg0, %c0_i32, %arg1, %c0_i32_0 : i32, i32, i32, i32
  }
  func.func @transform_1(%arg0: i32, %arg1: i32) -> (i32, i32, i32, i32) {
    %c0_i32 = arith.constant 0 : i32
    %c0_i32_0 = arith.constant 0 : i32
    %c0_i32_1 = arith.constant 0 : i32
    return %arg0, %c0_i32, %arg1, %c0_i32_0 : i32, i32, i32, i32
  }
  func.func @transform_2(%arg0: i32, %arg1: i32) -> (i32, i32, i32, i32) {
    %c0_i32 = arith.constant 0 : i32
    %c0_i32_0 = arith.constant 0 : i32
    %c0_i32_1 = arith.constant 0 : i32
    %c0_i32_2 = arith.constant 0 : i32
    return %arg0, %c0_i32, %c0_i32_0, %c0_i32_1 : i32, i32, i32, i32
  }
  func.func @transform_3(%arg0: i32, %arg1: i32) -> (i32, i32, i32, i32) {
    %c0_i32 = arith.constant 0 : i32
    %c0_i32_0 = arith.constant 0 : i32
    %c0_i32_1 = arith.constant 0 : i32
    %c0_i32_2 = arith.constant 0 : i32
    return %arg0, %c0_i32, %c0_i32_0, %c0_i32_1 : i32, i32, i32, i32
  }
  func.func @transform_4(%arg0: i32, %arg1: i32) -> (i32, i32, i32, i32) {
    %c0_i32 = arith.constant 0 : i32
    %c0_i32_0 = arith.constant 0 : i32
    %c0_i32_1 = arith.constant 0 : i32
    %c0_i32_2 = arith.constant 0 : i32
    %c0_i32_3 = arith.constant 0 : i32
    return %c0_i32, %c0_i32_0, %c0_i32_1, %c0_i32_2 : i32, i32, i32, i32
  }
  func.func @transform_5(%arg0: i32, %arg1: i32) -> (i32, i32, i32, i32) {
    %c0_i32 = arith.constant 0 : i32
    %c0_i32_0 = arith.constant 0 : i32
    %c0_i32_1 = arith.constant 0 : i32
    %c0_i32_2 = arith.constant 0 : i32
    %c0_i32_3 = arith.constant 0 : i32
    return %c0_i32, %c0_i32_0, %c0_i32_1, %c0_i32_2 : i32, i32, i32, i32
  }
  func.func @transform_6(%arg0: i32, %arg1: i32) -> (i32, i32, i32, i32) {
    %c0_i32 = arith.constant 0 : i32
    %c0_i32_0 = arith.constant 0 : i32
    %c0_i32_1 = arith.constant 0 : i32
    return %arg0, %c0_i32, %arg1, %c0_i32_0 : i32, i32, i32, i32
  }
}

</mosaic_0001>

<llo_original>
// kernel: dinv_block_forward.1
$region0: #{dinv_block_forward.1}
  #allocation0 [shape = 'u32[]', space=smem, size = 0x4, offset = 0x4, fixed_abs, tag = 'smem constant byte address 0x4 - core index']
  #allocation1 [shape = 'u32[144,128]{1,0:T(1,128)}', space=vmem, size = 0x12000, scoped, tag = 'internal scratch']
  %s0 = inlined_call_operand.hbm [shape: f32[2,4,16,16], index: 0, kind: input, shape index: {}]
  %s1 = inlined_call_operand.hbm [shape: f32[2,8,16,16], index: 1, kind: input, shape index: {}]
  %s2 = inlined_call_operand.vmem [shape: f32[2,8,1,1], index: 2, kind: input, shape index: {}]
  %s3 = inlined_call_operand.vmem [shape: f32[2,8,1,1], index: 3, kind: input, shape index: {}]
  %s4 = inlined_call_operand.vmem [shape: f32[4,8,1,1], index: 4, kind: input, shape index: {}]
  %s5 = inlined_call_operand.vmem [shape: f32[1,8,1,1], index: 5, kind: input, shape index: {}]
  %s6 = inlined_call_operand.vmem [shape: f32[2,4,16,64], index: 6, kind: output, shape index: {}]
  %s7 = sld [smem:[#allocation0]]
  $region99: #{dinv_block_forward.1} parent=0
    _
  %s9 = ssub.s32 1, %s7
  %s10 = scalar_select 0, %s9, %s7
  $region1: #{dinv_block_forward.1} parent=0
    #allocation2 [shape = 'u8[32768]{0}', space=vmem, size = 0x8000, scoped, tag = 'input window, operand 0']
    #allocation3 [shape = 's32[2]{0}', space=sflag, size = 0x8, scoped, tag = 'scoped memory for dinv_block_forward.1']
    #allocation4 [shape = 'u8[65536]{0}', space=vmem, size = 0x10000, scoped, tag = 'input window, operand 1']
    #allocation5 [shape = 's32[2]{0}', space=sflag, size = 0x8, scoped, tag = 'scoped memory for dinv_block_forward.1']
    #allocation6 [shape = 'u8[32768]{0}', space=vmem, size = 0x8000, scoped, tag = 'output window, operand 0']
    %11 = vsyncpa [#allocation3], 0
    %s12 = scalar_lea.sflag [#allocation3], 1
    %13 = vsyncpa %s12, 0
    %14 = vsyncpa [#allocation5], 0
    %s15 = scalar_lea.sflag [#allocation5], 1
    %16 = vsyncpa %s15, 0
    loop: start=0, step=1, limit=6
    $region2: #{dinv_block_forward.1} parent=1 // loop_pre_header
      _
    $region3: #{dinv_block_forward.1} parent=1 // loop_header
      %s18 = sphi 0, %s22
      %p19 = scmp.ge.s32.totalorder %s18, 6
      %s25 = sphi 0, %s37
      %s26 = sphi 0, %s33
      %s27 = sphi 0, %s25
      %s28 = sphi 0, %s26
      %s29 = sphi 0, %s27
      %s30 = sphi 0, %s28
      %s42 = sphi 0, %s44
      %s45 = sphi 0, %s42
      %s46 = sphi 0, %s45
      %s62 = sphi 0, %s46
      %s70 = sphi 0, %s72
      %s73 = sphi 0, %s70
      %s74 = sphi 0, %s73
      %s90 = sphi 0, %s74
      %s96 = sphi 0, %s98
      %s99 = sphi 0, %s96
      %s100 = sphi 0, %s99
      %s116 = sphi 0, %s100
      %s122 = sphi 0, %s124
      %s125 = sphi 0, %s122
      %s126 = sphi 0, %s125
      %s142 = sphi 0, %s126
      %s146 = sphi 0, %s146
      %s148 = sphi 0, %s146
      %s149 = sphi 0, %s148
      %s163 = sphi 0, %s149
      %s167 = sphi 0, %s167
      %s169 = sphi 0, %s167
      %s170 = sphi 0, %s169
      %s184 = sphi 0, %s170
      %s192 = sphi 0, %s194
      %s195 = sphi 0, %s192
      %s196 = sphi 0, %s195
      %s212 = sphi 0, %s196
    $region4: #{dinv_block_forward.1} parent=1 // loop_header_branch
      %21 = sbr.rel (%p19) target = $region8
    $region5: #{dinv_block_forward.1} parent=1 // loop_body
      %s23 = ssub.s32 %s18, 1
      %s24 = ssub.s32 %s18, 2
      %s31 = sadd.s32 1, %s26
      %p32 = scmp.ge.s32.totalorder %s31, 2
      %s33 = scalar_select %p32, 0, %s31
      %s34 = sadd.s32 1, %s25
      %s35 = scalar_select %p32, %s34, %s25
      %p36 = scmp.ge.s32.totalorder %s35, 2
      %s37 = scalar_select %p36, 0, %s35
      %s38 = ssub.s32 %s25, %s37
      %s39 = ssub.s32 %s26, %s33
      %s40 = sor.u32 %s38, %s39
      %p41 = scmp.eq.s32.totalorder %s40, 0
      %s43 = sadd.s32 %s42, 1
      %s44 = scalar_select %p41, %s42, %s43
      %p47 = pneg %p41
      %p48 = scmp.eq.s32.totalorder %s18, 3
      %p49 = por %p47, %p48
      %p50 = scmp.ne.s32.totalorder %s42, %s45
      %p51 = scmp.eq.s32.totalorder %s18, 0
      %p52 = por %p50, %p51
      %p53 = scmp.ne.s32.totalorder %s42, %s45
      %p54 = scmp.eq.s32.totalorder %s23, 3
      %p55 = por %p53, %p54
      %p56 = scmp.ne.s32.totalorder %s45, %s46
      %p57 = scmp.eq.s32.totalorder %s23, 0
      %p58 = por %p56, %p57
      %p59 = scmp.ne.s32.totalorder %s45, %s46
      %p60 = scmp.eq.s32.totalorder %s24, 3
      %p61 = por %p59, %p60
      %p63 = scmp.ne.s32.totalorder %s46, %s62
      %p64 = scmp.eq.s32.totalorder %s24, 0
      %p65 = por %p63, %p64
      %s66 = ssub.s32 %s25, %s37
      %s67 = ssub.s32 %s26, %s33
      %s68 = sor.u32 %s66, %s67
      %p69 = scmp.eq.s32.totalorder %s68, 0
      %s71 = sadd.s32 %s70, 1
      %s72 = scalar_select %p69, %s70, %s71
      %p75 = pneg %p69
      %p76 = scmp.eq.s32.totalorder %s18, 3
      %p77 = por %p75, %p76
      %p78 = scmp.ne.s32.totalorder %s70, %s73
      %p79 = scmp.eq.s32.totalorder %s18, 0
      %p80 = por %p78, %p79
      %p81 = scmp.ne.s32.totalorder %s70, %s73
      %p82 = scmp.eq.s32.totalorder %s23, 3
      %p83 = por %p81, %p82
      %p84 = scmp.ne.s32.totalorder %s73, %s74
      %p85 = scmp.eq.s32.totalorder %s23, 0
      %p86 = por %p84, %p85
      %p87 = scmp.ne.s32.totalorder %s73, %s74
      %p88 = scmp.eq.s32.totalorder %s24, 3
      %p89 = por %p87, %p88
      %p91 = scmp.ne.s32.totalorder %s74, %s90
      %p92 = scmp.eq.s32.totalorder %s24, 0
      %p93 = por %p91, %p92
      %s94 = ssub.s32 %s25, %s37
      %p95 = scmp.eq.s32.totalorder %s94, 0
      %s97 = sadd.s32 %s96, 1
      %s98 = scalar_select %p95, %s96, %s97
      %p101 = pneg %p95
      %p102 = scmp.eq.s32.totalorder %s18, 3
      %p103 = por %p101, %p102
      %p104 = scmp.ne.s32.totalorder %s96, %s99
      %p105 = scmp.eq.s32.totalorder %s18, 0
      %p106 = por %p104, %p105
      %p107 = scmp.ne.s32.totalorder %s96, %s99
      %p108 = scmp.eq.s32.totalorder %s23, 3
      %p109 = por %p107, %p108
      %p110 = scmp.ne.s32.totalorder %s99, %s100
      %p111 = scmp.eq.s32.totalorder %s23, 0
      %p112 = por %p110, %p111
      %p113 = scmp.ne.s32.totalorder %s99, %s100
      %p114 = scmp.eq.s32.totalorder %s24, 3
      %p115 = por %p113, %p114
      %p117 = scmp.ne.s32.totalorder %s100, %s116
      %p118 = scmp.eq.s32.totalorder %s24, 0
      %p119 = por %p117, %p118
      %s120 = ssub.s32 %s25, %s37
      %p121 = scmp.eq.s32.totalorder %s120, 0
      %s123 = sadd.s32 %s122, 1
      %s124 = scalar_select %p121, %s122, %s123
      %p127 = pneg %p121
      %p128 = scmp.eq.s32.totalorder %s18, 3
      %p129 = por %p127, %p128
      %p130 = scmp.ne.s32.totalorder %s122, %s125
      %p131 = scmp.eq.s32.totalorder %s18, 0
      %p132 = por %p130, %p131
      %p133 = scmp.ne.s32.totalorder %s122, %s125
      %p134 = scmp.eq.s32.totalorder %s23, 3
      %p135 = por %p133, %p134
      %p136 = scmp.ne.s32.totalorder %s125, %s126
      %p137 = scmp.eq.s32.totalorder %s23, 0
      %p138 = por %p136, %p137
      %p139 = scmp.ne.s32.totalorder %s125, %s126
      %p140 = scmp.eq.s32.totalorder %s24, 3
      %p141 = por %p139, %p140
      %p143 = scmp.ne.s32.totalorder %s126, %s142
      %p144 = scmp.eq.s32.totalorder %s24, 0
      %p145 = por %p143, %p144
      %s147 = sadd.s32 %s146, 1
      %p150 = scmp.eq.s32.totalorder %s18, 3
      %p151 = scmp.ne.s32.totalorder %s146, %s148
      %p152 = scmp.eq.s32.totalorder %s18, 0
      %p153 = por %p151, %p152
      %p154 = scmp.ne.s32.totalorder %s146, %s148
      %p155 = scmp.eq.s32.totalorder %s23, 3
      %p156 = por %p154, %p155
      %p157 = scmp.ne.s32.totalorder %s148, %s149
      %p158 = scmp.eq.s32.totalorder %s23, 0
      %p159 = por %p157, %p158
      %p160 = scmp.ne.s32.totalorder %s148, %s149
      %p161 = scmp.eq.s32.totalorder %s24, 3
      %p162 = por %p160, %p161
      %p164 = scmp.ne.s32.totalorder %s149, %s163
      %p165 = scmp.eq.s32.totalorder %s24, 0
      %p166 = por %p164, %p165
      %s168 = sadd.s32 %s167, 1
      %p171 = scmp.eq.s32.totalorder %s18, 3
      %p172 = scmp.ne.s32.totalorder %s167, %s169
      %p173 = scmp.eq.s32.totalorder %s18, 0
      %p174 = por %p172, %p173
      %p175 = scmp.ne.s32.totalorder %s167, %s169
      %p176 = scmp.eq.s32.totalorder %s23, 3
      %p177 = por %p175, %p176
      %p178 = scmp.ne.s32.totalorder %s169, %s170
      %p179 = scmp.eq.s32.totalorder %s23, 0
      %p180 = por %p178, %p179
      %p181 = scmp.ne.s32.totalorder %s169, %s170
      %p182 = scmp.eq.s32.totalorder %s24, 3
      %p183 = por %p181, %p182
      %p185 = scmp.ne.s32.totalorder %s170, %s184
      %p186 = scmp.eq.s32.totalorder %s24, 0
      %p187 = por %p185, %p186
      %s188 = ssub.s32 %s25, %s37
      %s189 = ssub.s32 %s26, %s33
      %s190 = sor.u32 %s188, %s189
      %p191 = scmp.eq.s32.totalorder %s190, 0
      %s193 = sadd.s32 %s192, 1
      %s194 = scalar_select %p191, %s192, %s193
      %p197 = pneg %p191
      %p198 = scmp.eq.s32.totalorder %s18, 3
      %p199 = por %p197, %p198
      %p200 = scmp.ne.s32.totalorder %s192, %s195
      %p201 = scmp.eq.s32.totalorder %s18, 0
      %p202 = por %p200, %p201
      %p203 = scmp.ne.s32.totalorder %s192, %s195
      %p204 = scmp.eq.s32.totalorder %s23, 3
      %p205 = por %p203, %p204
      %p206 = scmp.ne.s32.totalorder %s195, %s196
      %p207 = scmp.eq.s32.totalorder %s23, 0
      %p208 = por %p206, %p207
      %p209 = scmp.ne.s32.totalorder %s195, %s196
      %p210 = scmp.eq.s32.totalorder %s24, 3
      %p211 = por %p209, %p210
      %p213 = scmp.ne.s32.totalorder %s196, %s212
      %p214 = scmp.eq.s32.totalorder %s24, 0
      %p215 = por %p213, %p214
      %p216 = scmp.le.s32.totalorder 1, %s18
      %p217 = scmp.lt.s32.totalorder %s18, 5
      %p218 = pnand %p216, %p217
      %p219 = pneg %p218
      // Predicated region
      $region9: #{dinv_block_forward.1} parent=5 // pred_check
        _
      $region10: #{dinv_block_forward.1} parent=5 // pred_check_branch
        %221 = sbr.rel (%p218) target = $region12
      $region11: #{dinv_block_forward.1} parent=5 // pred_region
        %s222 = ssub.s32 %s18, 1
        // Predicated region
        $region13: #{dinv_block_forward.1} parent=11 // pred_check
          %p223 = pneg %p159
        $region14: #{dinv_block_forward.1} parent=11 // pred_check_branch
          %225 = sbr.rel (%p223) target = $region16
        $region15: #{dinv_block_forward.1} parent=11 // pred_region
          _
        $region16: #{dinv_block_forward.1} parent=11 // pred_fallthru
          _
        // Predicated region
        $region17: #{dinv_block_forward.1} parent=11 // pred_check
          %p226 = pneg %p180
        $region18: #{dinv_block_forward.1} parent=11 // pred_check_branch
          %228 = sbr.rel (%p226) target = $region20
        $region19: #{dinv_block_forward.1} parent=11 // pred_region
          _
        $region20: #{dinv_block_forward.1} parent=11 // pred_fallthru
          _
      $region12: #{dinv_block_forward.1} parent=5 // pred_fallthru
        _
      %p229 = scmp.lt.s32.totalorder %s18, 4
      // Predicated region
      $region21: #{dinv_block_forward.1} parent=5 // pred_check
        %p230 = pneg %p229
      $region22: #{dinv_block_forward.1} parent=5 // pred_check_branch
        %232 = sbr.rel (%p230) target = $region24
      $region23: #{dinv_block_forward.1} parent=5 // pred_region
        // Predicated region
        $region25: #{dinv_block_forward.1} parent=23 // pred_check
          %p233 = pneg %p52
        $region26: #{dinv_block_forward.1} parent=23 // pred_check_branch
          %235 = sbr.rel (%p233) target = $region28
        $region27: #{dinv_block_forward.1} parent=23 // pred_region
          %s236 = sand.u32 %s42, 1
          %s237 = scalar_lea.sflag [#allocation3], %s236
          %s238 = sand.u32 %s42, 1
          %s239 = smul.addr %s238, 32
          %s240 = scalar_lea.vmem [#allocation2], %s239
          %s242 = ssub.s32 512, 512
          %243 = vsyncadd %s237, %s242
          %s244 = smul.addr %s25, 8
          %s245 = sadd.s32 %s26, %s244
          %s246 = smul.addr %s245, 128
          %s247 = scalar_lea.hbm %s0, %s246
          %s248 = sshll.u32 %s240, 4
          %s249 = int_to_ptr.vmem [resolvable:$true] %s248
          %254 = dma.hbm_to_vmem [thread:$0]  %s247, 512, %s249, %s237, 256, 128, 8
        $region28: #{dinv_block_forward.1} parent=23 // pred_fallthru
          _
        // Predicated region
        $region29: #{dinv_block_forward.1} parent=23 // pred_check
          %p255 = pneg %p80
        $region30: #{dinv_block_forward.1} parent=23 // pred_check_branch
          %257 = sbr.rel (%p255) target = $region32
        $region31: #{dinv_block_forward.1} parent=23 // pred_region
          %s258 = sand.u32 %s70, 1
          %s259 = scalar_lea.sflag [#allocation5], %s258
          %s260 = sand.u32 %s70, 1
          %s261 = smul.addr %s260, 64
          %s262 = scalar_lea.vmem [#allocation4], %s261
          %s264 = ssub.s32 1024, 1024
          %265 = vsyncadd %s259, %s264
          %s266 = smul.addr %s25, 16
          %s267 = sadd.s32 %s26, %s266
          %s268 = smul.addr %s267, 128
          %s269 = scalar_lea.hbm %s1, %s268
          %s270 = sshll.u32 %s262, 4
          %s271 = int_to_ptr.vmem [resolvable:$true] %s270
          %276 = dma.hbm_to_vmem [thread:$0]  %s269, 1024, %s271, %s259, 256, 128, 8
        $region32: #{dinv_block_forward.1} parent=23 // pred_fallthru
          _
        // Predicated region
        $region33: #{dinv_block_forward.1} parent=23 // pred_check
          %p277 = pneg %p106
        $region34: #{dinv_block_forward.1} parent=23 // pred_check_branch
          %279 = sbr.rel (%p277) target = $region36
        $region35: #{dinv_block_forward.1} parent=23 // pred_region
          %p280 = scmp.lt.s32.totalorder %s25, 1
          %s281 = scalar_select %p280, %s25, 1
          %s282 = smul.addr %s281, 8
          %s283 = scalar_lea.vmem %s2, %s282
        $region36: #{dinv_block_forward.1} parent=23 // pred_fallthru
          _
        // Predicated region
        $region37: #{dinv_block_forward.1} parent=23 // pred_check
          %p284 = pneg %p132
        $region38: #{dinv_block_forward.1} parent=23 // pred_check_branch
          %286 = sbr.rel (%p284) target = $region40
        $region39: #{dinv_block_forward.1} parent=23 // pred_region
          %p287 = scmp.lt.s32.totalorder %s25, 1
          %s288 = scalar_select %p287, %s25, 1
          %s289 = smul.addr %s288, 8
          %s290 = scalar_lea.vmem %s3, %s289
        $region40: #{dinv_block_forward.1} parent=23 // pred_fallthru
          _
      $region24: #{dinv_block_forward.1} parent=5 // pred_fallthru
        _
      %p291 = scmp.le.s32.totalorder 1, %s18
      %p292 = scmp.lt.s32.totalorder %s18, 5
      %p293 = pnand %p291, %p292
      %p294 = pneg %p293
      // Predicated region
      $region41: #{dinv_block_forward.1} parent=5 // pred_check
        _
      $region42: #{dinv_block_forward.1} parent=5 // pred_check_branch
        %296 = sbr.rel (%p293) target = $region44
      $region43: #{dinv_block_forward.1} parent=5 // pred_region
        %s297 = ssub.s32 %s18, 1
        %s298 = sand.u32 %s45, 1
        %s299 = scalar_lea.sflag [#allocation3], %s298
        %s300 = sand.u32 %s45, 1
        %s301 = smul.addr %s300, 32
        %s302 = scalar_lea.vmem [#allocation2], %s301
        // Predicated region
        $region45: #{dinv_block_forward.1} parent=43 // pred_check
          %p303 = pneg %p58
        $region46: #{dinv_block_forward.1} parent=43 // pred_check_branch
          %305 = sbr.rel (%p303) target = $region48
        $region47: #{dinv_block_forward.1} parent=43 // pred_region
          %306 = dma.done %s299, 512
        $region48: #{dinv_block_forward.1} parent=43 // pred_fallthru
          _
        %s307 = sand.u32 %s73, 1
        %s308 = scalar_lea.sflag [#allocation5], %s307
        %s309 = sand.u32 %s73, 1
        %s310 = smul.addr %s309, 64
        %s311 = scalar_lea.vmem [#allocation4], %s310
        // Predicated region
        $region49: #{dinv_block_forward.1} parent=43 // pred_check
          %p312 = pneg %p86
        $region50: #{dinv_block_forward.1} parent=43 // pred_check_branch
          %314 = sbr.rel (%p312) target = $region52
        $region51: #{dinv_block_forward.1} parent=43 // pred_region
          %315 = dma.done %s308, 1024
        $region52: #{dinv_block_forward.1} parent=43 // pred_fallthru
          _
        %s316 = sand.u32 %s45, 1
        %s317 = scalar_lea.sflag [#allocation3], %s316
        %s318 = sand.u32 %s45, 1
        %s319 = smul.addr %s318, 32
        %s320 = scalar_lea.vmem [#allocation2], %s319
        %p321 = pneg %p58
        %p322 = pneg %p55
        %s323 = sand.u32 %s73, 1
        %s324 = scalar_lea.sflag [#allocation5], %s323
        %s325 = sand.u32 %s73, 1
        %s326 = smul.addr %s325, 64
        %s327 = scalar_lea.vmem [#allocation4], %s326
        %p328 = pneg %p86
        %p329 = pneg %p83
        %p330 = scmp.lt.s32.totalorder %s27, 1
        %s331 = scalar_select %p330, %s27, 1
        %s332 = smul.addr %s331, 8
        %s333 = scalar_lea.vmem %s2, %s332
        %p334 = pneg %p112
        %p335 = pneg %p109
        %p336 = scmp.lt.s32.totalorder %s27, 1
        %s337 = scalar_select %p336, %s27, 1
        %s338 = smul.addr %s337, 8
        %s339 = scalar_lea.vmem %s3, %s338
        %p340 = pneg %p138
        %p341 = pneg %p135
        %p342 = pneg %p159
        %p343 = pneg %p156
        %p344 = pneg %p180
        %p345 = pneg %p177
        %p346 = pneg %p208
        %p347 = pneg %p205
        %s348 = sand.u32 %s195, 1
        %s349 = sand.u32 %s195, 1
        %s350 = smul.addr %s349, 32
        %s351 = scalar_lea.vmem [#allocation6], %s350
        %p352 = scmp.lt.s32.totalorder %s27, 1
        %s353 = scalar_select %p352, %s27, 1
        %s354 = smul.addr %s353, 8
        %s355 = scalar_lea.vmem %s2, %s354
        %p356 = scmp.lt.s32.totalorder %s27, 1
        %s357 = scalar_select %p356, %s27, 1
        %s358 = smul.addr %s357, 8
        %s359 = scalar_lea.vmem %s3, %s358
        %v360 = vld [vmem:[%s302] sm:$0xff]
        %v361 = vld [vmem:[%s302 + $0x8] sm:$0xff]
        %v362 = vld [vmem:[%s302 + $0x10] sm:$0xff]
        %v363 = vld [vmem:[%s302 + $0x18] sm:$0xff]
        %v364 = vld [vmem:[%s311] sm:$0xff]
        %v365 = vld [vmem:[%s311 + $0x8] sm:$0xff]
        %v366 = vld [vmem:[%s311 + $0x10] sm:$0xff]
        %v367 = vld [vmem:[%s311 + $0x18] sm:$0xff]
        %v368 = vld [vmem:[%s311 + $0x20] sm:$0xff]
        %v369 = vld [vmem:[%s311 + $0x28] sm:$0xff]
        %v370 = vld [vmem:[%s311 + $0x30] sm:$0xff]
        %v371 = vld [vmem:[%s311 + $0x38] sm:$0xff]
        %v372 = vld [vmem:[%s355] sm:$0x1]
        %v373 = vld [vmem:[%s355 + $0x1] sm:$0x1]
        %v374 = vld [vmem:[%s355 + $0x2] sm:$0x1]
        %v375 = vld [vmem:[%s355 + $0x3] sm:$0x1]
        %v376 = vld [vmem:[%s355 + $0x4] sm:$0x1]
        %v377 = vld [vmem:[%s355 + $0x5] sm:$0x1]
        %v378 = vld [vmem:[%s355 + $0x6] sm:$0x1]
        %v379 = vld [vmem:[%s355 + $0x7] sm:$0x1]
        %v380 = vld [vmem:[%s359] sm:$0x1]
        %v381 = vld [vmem:[%s359 + $0x1] sm:$0x1]
        %v382 = vld [vmem:[%s359 + $0x2] sm:$0x1]
        %v383 = vld [vmem:[%s359 + $0x3] sm:$0x1]
        %v384 = vld [vmem:[%s359 + $0x4] sm:$0x1]
        %v385 = vld [vmem:[%s359 + $0x5] sm:$0x1]
        %v386 = vld [vmem:[%s359 + $0x6] sm:$0x1]
        %v387 = vld [vmem:[%s359 + $0x7] sm:$0x1]
        %v388 = vld [vmem:[%s4] sm:$0x1]
        %v389 = vld [vmem:[%s4 + $0x1] sm:$0x1]
        %v390 = vld [vmem:[%s4 + $0x2] sm:$0x1]
        %v391 = vld [vmem:[%s4 + $0x3] sm:$0x1]
        %v392 = vld [vmem:[%s4 + $0x4] sm:$0x1]
        %v393 = vld [vmem:[%s4 + $0x5] sm:$0x1]
        %v394 = vld [vmem:[%s4 + $0x6] sm:$0x1]
        %v395 = vld [vmem:[%s4 + $0x7] sm:$0x1]
        %v396 = vld [vmem:[%s4 + $0x8] sm:$0x1]
        %v397 = vld [vmem:[%s4 + $0x9] sm:$0x1]
        %v398 = vld [vmem:[%s4 + $0xa] sm:$0x1]
        %v399 = vld [vmem:[%s4 + $0xb] sm:$0x1]
        %v400 = vld [vmem:[%s4 + $0xc] sm:$0x1]
        %v401 = vld [vmem:[%s4 + $0xd] sm:$0x1]
        %v402 = vld [vmem:[%s4 + $0xe] sm:$0x1]
        %v403 = vld [vmem:[%s4 + $0xf] sm:$0x1]
        %v404 = vld [vmem:[%s4 + $0x10] sm:$0x1]
        %v405 = vld [vmem:[%s4 + $0x11] sm:$0x1]
        %v406 = vld [vmem:[%s4 + $0x12] sm:$0x1]
        %v407 = vld [vmem:[%s4 + $0x13] sm:$0x1]
        %v408 = vld [vmem:[%s4 + $0x14] sm:$0x1]
        %v409 = vld [vmem:[%s4 + $0x15] sm:$0x1]
        %v410 = vld [vmem:[%s4 + $0x16] sm:$0x1]
        %v411 = vld [vmem:[%s4 + $0x17] sm:$0x1]
        %v412 = vld [vmem:[%s4 + $0x18] sm:$0x1]
        %v413 = vld [vmem:[%s4 + $0x19] sm:$0x1]
        %v414 = vld [vmem:[%s4 + $0x1a] sm:$0x1]
        %v415 = vld [vmem:[%s4 + $0x1b] sm:$0x1]
        %v416 = vld [vmem:[%s4 + $0x1c] sm:$0x1]
        %v417 = vld [vmem:[%s4 + $0x1d] sm:$0x1]
        %v418 = vld [vmem:[%s4 + $0x1e] sm:$0x1]
        %v419 = vld [vmem:[%s4 + $0x1f] sm:$0x1]
        %v420 = vld [vmem:[%s5] sm:$0x1]
        %v421 = vld [vmem:[%s5 + $0x1] sm:$0x1]
        %v422 = vld [vmem:[%s5 + $0x2] sm:$0x1]
        %v423 = vld [vmem:[%s5 + $0x3] sm:$0x1]
        %v424 = vld [vmem:[%s5 + $0x4] sm:$0x1]
        %v425 = vld [vmem:[%s5 + $0x5] sm:$0x1]
        %v426 = vld [vmem:[%s5 + $0x6] sm:$0x1]
        %v427 = vld [vmem:[%s5 + $0x7] sm:$0x1]
        %v436 = vlaneseq
        %v437 = vshrl.u32 %v436, 7
        %v438 = vsub.s32 0, %v437
        %v439 = vrot.slane %v420, %v438
        %v440 = vlaneseq
        %v441 = vshrl.u32 %v440, 7
        %v442 = vsub.s32 0, %v441
        %v443 = vrot.slane %v421, %v442
        %v444 = vlaneseq
        %v445 = vshrl.u32 %v444, 7
        %v446 = vsub.s32 0, %v445
        %v447 = vrot.slane %v422, %v446
        %v448 = vlaneseq
        %v449 = vshrl.u32 %v448, 7
        %v450 = vsub.s32 0, %v449
        %v451 = vrot.slane %v423, %v450
        %v452 = vlaneseq
        %v453 = vshrl.u32 %v452, 7
        %v454 = vsub.s32 0, %v453
        %v455 = vrot.slane %v424, %v454
        %v456 = vlaneseq
        %v457 = vshrl.u32 %v456, 7
        %v458 = vsub.s32 0, %v457
        %v459 = vrot.slane %v425, %v458
        %v460 = vlaneseq
        %v461 = vshrl.u32 %v460, 7
        %v462 = vsub.s32 0, %v461
        %v463 = vrot.slane %v426, %v462
        %v464 = vlaneseq
        %v465 = vshrl.u32 %v464, 7
        %v466 = vsub.s32 0, %v465
        %v467 = vrot.slane %v427, %v466
        %468 = vset.pattern.permute.xlu0 0
        %469 = vperm.xlu0 %468, %v439
        %v470 = vpop.permute.xlu0 %469
        %472 = vset.pattern.permute.xlu0 0
        %473 = vperm.xlu0 %472, %v443
        %v474 = vpop.permute.xlu0 %473
        %476 = vset.pattern.permute.xlu0 0
        %477 = vperm.xlu0 %476, %v447
        %v478 = vpop.permute.xlu0 %477
        %480 = vset.pattern.permute.xlu0 0
        %481 = vperm.xlu0 %480, %v451
        %v482 = vpop.permute.xlu0 %481
        %484 = vset.pattern.permute.xlu0 0
        %485 = vperm.xlu0 %484, %v455
        %v486 = vpop.permute.xlu0 %485
        %488 = vset.pattern.permute.xlu0 0
        %489 = vperm.xlu0 %488, %v459
        %v490 = vpop.permute.xlu0 %489
        %492 = vset.pattern.permute.xlu0 0
        %493 = vperm.xlu0 %492, %v463
        %v494 = vpop.permute.xlu0 %493
        %496 = vset.pattern.permute.xlu0 0
        %497 = vperm.xlu0 %496, %v467
        %v498 = vpop.permute.xlu0 %497
        %v500 = vadd.f32 %v364, %v470
        %v501 = vadd.f32 %v365, %v474
        %v502 = vadd.f32 %v366, %v478
        %v503 = vadd.f32 %v367, %v482
        %v504 = vadd.f32 %v368, %v486
        %v505 = vadd.f32 %v369, %v490
        %v506 = vadd.f32 %v370, %v494
        %v507 = vadd.f32 %v371, %v498
        %v516 = vlaneseq
        %v517 = vshrl.u32 %v516, 7
        %v518 = vsub.s32 0, %v517
        %v519 = vrot.slane %v388, %v518
        %v520 = vlaneseq
        %v521 = vshrl.u32 %v520, 7
        %v522 = vsub.s32 0, %v521
        %v523 = vrot.slane %v389, %v522
        %v524 = vlaneseq
        %v525 = vshrl.u32 %v524, 7
        %v526 = vsub.s32 0, %v525
        %v527 = vrot.slane %v390, %v526
        %v528 = vlaneseq
        %v529 = vshrl.u32 %v528, 7
        %v530 = vsub.s32 0, %v529
        %v531 = vrot.slane %v391, %v530
        %v532 = vlaneseq
        %v533 = vshrl.u32 %v532, 7
        %v534 = vsub.s32 0, %v533
        %v535 = vrot.slane %v392, %v534
        %v536 = vlaneseq
        %v537 = vshrl.u32 %v536, 7
        %v538 = vsub.s32 0, %v537
        %v539 = vrot.slane %v393, %v538
        %v540 = vlaneseq
        %v541 = vshrl.u32 %v540, 7
        %v542 = vsub.s32 0, %v541
        %v543 = vrot.slane %v394, %v542
        %v544 = vlaneseq
        %v545 = vshrl.u32 %v544, 7
        %v546 = vsub.s32 0, %v545
        %v547 = vrot.slane %v395, %v546
        %548 = vset.pattern.permute.xlu0 0
        %549 = vperm.xlu0 %548, %v519
        %v550 = vpop.permute.xlu0 %549
        %552 = vset.pattern.permute.xlu0 0
        %553 = vperm.xlu0 %552, %v523
        %v554 = vpop.permute.xlu0 %553
        %556 = vset.pattern.permute.xlu0 0
        %557 = vperm.xlu0 %556, %v527
        %v558 = vpop.permute.xlu0 %557
        %560 = vset.pattern.permute.xlu0 0
        %561 = vperm.xlu0 %560, %v531
        %v562 = vpop.permute.xlu0 %561
        %564 = vset.pattern.permute.xlu0 0
        %565 = vperm.xlu0 %564, %v535
        %v566 = vpop.permute.xlu0 %565
        %568 = vset.pattern.permute.xlu0 0
        %569 = vperm.xlu0 %568, %v539
        %v570 = vpop.permute.xlu0 %569
        %572 = vset.pattern.permute.xlu0 0
        %573 = vperm.xlu0 %572, %v543
        %v574 = vpop.permute.xlu0 %573
        %576 = vset.pattern.permute.xlu0 0
        %577 = vperm.xlu0 %576, %v547
        %v578 = vpop.permute.xlu0 %577
        %v580 = vmul.f32 %v550, %v360
        %v581 = vmul.f32 %v554, %v360
        %v582 = vmul.f32 %v558, %v360
        %v583 = vmul.f32 %v562, %v360
        %v584 = vmul.f32 %v566, %v360
        %v585 = vmul.f32 %v570, %v360
        %v586 = vmul.f32 %v574, %v360
        %v587 = vmul.f32 %v578, %v360
        %v588 = vadd.f32 %v500, %v580
        %v589 = vadd.f32 %v501, %v581
        %v590 = vadd.f32 %v502, %v582
        %v591 = vadd.f32 %v503, %v583
        %v592 = vadd.f32 %v504, %v584
        %v593 = vadd.f32 %v505, %v585
        %v594 = vadd.f32 %v506, %v586
        %v595 = vadd.f32 %v507, %v587
        %v604 = vlaneseq
        %v605 = vshrl.u32 %v604, 7
        %v606 = vsub.s32 0, %v605
        %v607 = vrot.slane %v396, %v606
        %v608 = vlaneseq
        %v609 = vshrl.u32 %v608, 7
        %v610 = vsub.s32 0, %v609
        %v611 = vrot.slane %v397, %v610
        %v612 = vlaneseq
        %v613 = vshrl.u32 %v612, 7
        %v614 = vsub.s32 0, %v613
        %v615 = vrot.slane %v398, %v614
        %v616 = vlaneseq
        %v617 = vshrl.u32 %v616, 7
        %v618 = vsub.s32 0, %v617
        %v619 = vrot.slane %v399, %v618
        %v620 = vlaneseq
        %v621 = vshrl.u32 %v620, 7
        %v622 = vsub.s32 0, %v621
        %v623 = vrot.slane %v400, %v622
        %v624 = vlaneseq
        %v625 = vshrl.u32 %v624, 7
        %v626 = vsub.s32 0, %v625
        %v627 = vrot.slane %v401, %v626
        %v628 = vlaneseq
        %v629 = vshrl.u32 %v628, 7
        %v630 = vsub.s32 0, %v629
        %v631 = vrot.slane %v402, %v630
        %v632 = vlaneseq
        %v633 = vshrl.u32 %v632, 7
        %v634 = vsub.s32 0, %v633
        %v635 = vrot.slane %v403, %v634
        %636 = vset.pattern.permute.xlu0 0
        %637 = vperm.xlu0 %636, %v607
        %v638 = vpop.permute.xlu0 %637
        %640 = vset.pattern.permute.xlu0 0
        %641 = vperm.xlu0 %640, %v611
        %v642 = vpop.permute.xlu0 %641
        %644 = vset.pattern.permute.xlu0 0
        %645 = vperm.xlu0 %644, %v615
        %v646 = vpop.permute.xlu0 %645
        %648 = vset.pattern.permute.xlu0 0
        %649 = vperm.xlu0 %648, %v619
        %v650 = vpop.permute.xlu0 %649
        %652 = vset.pattern.permute.xlu0 0
        %653 = vperm.xlu0 %652, %v623
        %v654 = vpop.permute.xlu0 %653
        %656 = vset.pattern.permute.xlu0 0
        %657 = vperm.xlu0 %656, %v627
        %v658 = vpop.permute.xlu0 %657
        %660 = vset.pattern.permute.xlu0 0
        %661 = vperm.xlu0 %660, %v631
        %v662 = vpop.permute.xlu0 %661
        %664 = vset.pattern.permute.xlu0 0
        %665 = vperm.xlu0 %664, %v635
        %v666 = vpop.permute.xlu0 %665
        %v668 = vmul.f32 %v638, %v361
        %v669 = vmul.f32 %v642, %v361
        %v670 = vmul.f32 %v646, %v361
        %v671 = vmul.f32 %v650, %v361
        %v672 = vmul.f32 %v654, %v361
        %v673 = vmul.f32 %v658, %v361
        %v674 = vmul.f32 %v662, %v361
        %v675 = vmul.f32 %v666, %v361
        %v676 = vadd.f32 %v588, %v668
        %v677 = vadd.f32 %v589, %v669
        %v678 = vadd.f32 %v590, %v670
        %v679 = vadd.f32 %v591, %v671
        %v680 = vadd.f32 %v592, %v672
        %v681 = vadd.f32 %v593, %v673
        %v682 = vadd.f32 %v594, %v674
        %v683 = vadd.f32 %v595, %v675
        %v692 = vlaneseq
        %v693 = vshrl.u32 %v692, 7
        %v694 = vsub.s32 0, %v693
        %v695 = vrot.slane %v404, %v694
        %v696 = vlaneseq
        %v697 = vshrl.u32 %v696, 7
        %v698 = vsub.s32 0, %v697
        %v699 = vrot.slane %v405, %v698
        %v700 = vlaneseq
        %v701 = vshrl.u32 %v700, 7
        %v702 = vsub.s32 0, %v701
        %v703 = vrot.slane %v406, %v702
        %v704 = vlaneseq
        %v705 = vshrl.u32 %v704, 7
        %v706 = vsub.s32 0, %v705
        %v707 = vrot.slane %v407, %v706
        %v708 = vlaneseq
        %v709 = vshrl.u32 %v708, 7
        %v710 = vsub.s32 0, %v709
        %v711 = vrot.slane %v408, %v710
        %v712 = vlaneseq
        %v713 = vshrl.u32 %v712, 7
        %v714 = vsub.s32 0, %v713
        %v715 = vrot.slane %v409, %v714
        %v716 = vlaneseq
        %v717 = vshrl.u32 %v716, 7
        %v718 = vsub.s32 0, %v717
        %v719 = vrot.slane %v410, %v718
        %v720 = vlaneseq
        %v721 = vshrl.u32 %v720, 7
        %v722 = vsub.s32 0, %v721
        %v723 = vrot.slane %v411, %v722
        %724 = vset.pattern.permute.xlu0 0
        %725 = vperm.xlu0 %724, %v695
        %v726 = vpop.permute.xlu0 %725
        %728 = vset.pattern.permute.xlu0 0
        %729 = vperm.xlu0 %728, %v699
        %v730 = vpop.permute.xlu0 %729
        %732 = vset.pattern.permute.xlu0 0
        %733 = vperm.xlu0 %732, %v703
        %v734 = vpop.permute.xlu0 %733
        %736 = vset.pattern.permute.xlu0 0
        %737 = vperm.xlu0 %736, %v707
        %v738 = vpop.permute.xlu0 %737
        %740 = vset.pattern.permute.xlu0 0
        %741 = vperm.xlu0 %740, %v711
        %v742 = vpop.permute.xlu0 %741
        %744 = vset.pattern.permute.xlu0 0
        %745 = vperm.xlu0 %744, %v715
        %v746 = vpop.permute.xlu0 %745
        %748 = vset.pattern.permute.xlu0 0
        %749 = vperm.xlu0 %748, %v719
        %v750 = vpop.permute.xlu0 %749
        %752 = vset.pattern.permute.xlu0 0
        %753 = vperm.xlu0 %752, %v723
        %v754 = vpop.permute.xlu0 %753
        %v756 = vmul.f32 %v726, %v362
        %v757 = vmul.f32 %v730, %v362
        %v758 = vmul.f32 %v734, %v362
        %v759 = vmul.f32 %v738, %v362
        %v760 = vmul.f32 %v742, %v362
        %v761 = vmul.f32 %v746, %v362
        %v762 = vmul.f32 %v750, %v362
        %v763 = vmul.f32 %v754, %v362
        %v764 = vadd.f32 %v676, %v756
        %v765 = vadd.f32 %v677, %v757
        %v766 = vadd.f32 %v678, %v758
        %v767 = vadd.f32 %v679, %v759
        %v768 = vadd.f32 %v680, %v760
        %v769 = vadd.f32 %v681, %v761
        %v770 = vadd.f32 %v682, %v762
        %v771 = vadd.f32 %v683, %v763
        %v780 = vlaneseq
        %v781 = vshrl.u32 %v780, 7
        %v782 = vsub.s32 0, %v781
        %v783 = vrot.slane %v412, %v782
        %v784 = vlaneseq
        %v785 = vshrl.u32 %v784, 7
        %v786 = vsub.s32 0, %v785
        %v787 = vrot.slane %v413, %v786
        %v788 = vlaneseq
        %v789 = vshrl.u32 %v788, 7
        %v790 = vsub.s32 0, %v789
        %v791 = vrot.slane %v414, %v790
        %v792 = vlaneseq
        %v793 = vshrl.u32 %v792, 7
        %v794 = vsub.s32 0, %v793
        %v795 = vrot.slane %v415, %v794
        %v796 = vlaneseq
        %v797 = vshrl.u32 %v796, 7
        %v798 = vsub.s32 0, %v797
        %v799 = vrot.slane %v416, %v798
        %v800 = vlaneseq
        %v801 = vshrl.u32 %v800, 7
        %v802 = vsub.s32 0, %v801
        %v803 = vrot.slane %v417, %v802
        %v804 = vlaneseq
        %v805 = vshrl.u32 %v804, 7
        %v806 = vsub.s32 0, %v805
        %v807 = vrot.slane %v418, %v806
        %v808 = vlaneseq
        %v809 = vshrl.u32 %v808, 7
        %v810 = vsub.s32 0, %v809
        %v811 = vrot.slane %v419, %v810
        %812 = vset.pattern.permute.xlu0 0
        %813 = vperm.xlu0 %812, %v783
        %v814 = vpop.permute.xlu0 %813
        %816 = vset.pattern.permute.xlu0 0
        %817 = vperm.xlu0 %816, %v787
        %v818 = vpop.permute.xlu0 %817
        %820 = vset.pattern.permute.xlu0 0
        %821 = vperm.xlu0 %820, %v791
        %v822 = vpop.permute.xlu0 %821
        %824 = vset.pattern.permute.xlu0 0
        %825 = vperm.xlu0 %824, %v795
        %v826 = vpop.permute.xlu0 %825
        %828 = vset.pattern.permute.xlu0 0
        %829 = vperm.xlu0 %828, %v799
        %v830 = vpop.permute.xlu0 %829
        %832 = vset.pattern.permute.xlu0 0
        %833 = vperm.xlu0 %832, %v803
        %v834 = vpop.permute.xlu0 %833
        %836 = vset.pattern.permute.xlu0 0
        %837 = vperm.xlu0 %836, %v807
        %v838 = vpop.permute.xlu0 %837
        %840 = vset.pattern.permute.xlu0 0
        %841 = vperm.xlu0 %840, %v811
        %v842 = vpop.permute.xlu0 %841
        %v844 = vmul.f32 %v814, %v363
        %v845 = vmul.f32 %v818, %v363
        %v846 = vmul.f32 %v822, %v363
        %v847 = vmul.f32 %v826, %v363
        %v848 = vmul.f32 %v830, %v363
        %v849 = vmul.f32 %v834, %v363
        %v850 = vmul.f32 %v838, %v363
        %v851 = vmul.f32 %v842, %v363
        %v852 = vadd.f32 %v764, %v844
        %v853 = vadd.f32 %v765, %v845
        %v854 = vadd.f32 %v766, %v846
        %v855 = vadd.f32 %v767, %v847
        %v856 = vadd.f32 %v768, %v848
        %v857 = vadd.f32 %v769, %v849
        %v858 = vadd.f32 %v770, %v850
        %v859 = vadd.f32 %v771, %v851
        %v868 = vlaneseq
        %v869 = vshrl.u32 %v868, 7
        %v870 = vsub.s32 0, %v869
        %v871 = vrot.slane %v372, %v870
        %v872 = vlaneseq
        %v873 = vshrl.u32 %v872, 7
        %v874 = vsub.s32 0, %v873
        %v875 = vrot.slane %v373, %v874
        %v876 = vlaneseq
        %v877 = vshrl.u32 %v876, 7
        %v878 = vsub.s32 0, %v877
        %v879 = vrot.slane %v374, %v878
        %v880 = vlaneseq
        %v881 = vshrl.u32 %v880, 7
        %v882 = vsub.s32 0, %v881
        %v883 = vrot.slane %v375, %v882
        %v884 = vlaneseq
        %v885 = vshrl.u32 %v884, 7
        %v886 = vsub.s32 0, %v885
        %v887 = vrot.slane %v376, %v886
        %v888 = vlaneseq
        %v889 = vshrl.u32 %v888, 7
        %v890 = vsub.s32 0, %v889
        %v891 = vrot.slane %v377, %v890
        %v892 = vlaneseq
        %v893 = vshrl.u32 %v892, 7
        %v894 = vsub.s32 0, %v893
        %v895 = vrot.slane %v378, %v894
        %v896 = vlaneseq
        %v897 = vshrl.u32 %v896, 7
        %v898 = vsub.s32 0, %v897
        %v899 = vrot.slane %v379, %v898
        %900 = vset.pattern.permute.xlu0 0
        %901 = vperm.xlu0 %900, %v871
        %v902 = vpop.permute.xlu0 %901
        %904 = vset.pattern.permute.xlu0 0
        %905 = vperm.xlu0 %904, %v875
        %v906 = vpop.permute.xlu0 %905
        %908 = vset.pattern.permute.xlu0 0
        %909 = vperm.xlu0 %908, %v879
        %v910 = vpop.permute.xlu0 %909
        %912 = vset.pattern.permute.xlu0 0
        %913 = vperm.xlu0 %912, %v883
        %v914 = vpop.permute.xlu0 %913
        %916 = vset.pattern.permute.xlu0 0
        %917 = vperm.xlu0 %916, %v887
        %v918 = vpop.permute.xlu0 %917
        %920 = vset.pattern.permute.xlu0 0
        %921 = vperm.xlu0 %920, %v891
        %v922 = vpop.permute.xlu0 %921
        %924 = vset.pattern.permute.xlu0 0
        %925 = vperm.xlu0 %924, %v895
        %v926 = vpop.permute.xlu0 %925
        %928 = vset.pattern.permute.xlu0 0
        %929 = vperm.xlu0 %928, %v899
        %v930 = vpop.permute.xlu0 %929
        %v932 = vmul.f32 %v364, %v902
        %v933 = vmul.f32 %v365, %v906
        %v934 = vmul.f32 %v366, %v910
        %v935 = vmul.f32 %v367, %v914
        %v936 = vmul.f32 %v368, %v918
        %v937 = vmul.f32 %v369, %v922
        %v938 = vmul.f32 %v370, %v926
        %v939 = vmul.f32 %v371, %v930
        %v948 = vlaneseq
        %v949 = vshrl.u32 %v948, 7
        %v950 = vsub.s32 0, %v949
        %v951 = vrot.slane %v380, %v950
        %v952 = vlaneseq
        %v953 = vshrl.u32 %v952, 7
        %v954 = vsub.s32 0, %v953
        %v955 = vrot.slane %v381, %v954
        %v956 = vlaneseq
        %v957 = vshrl.u32 %v956, 7
        %v958 = vsub.s32 0, %v957
        %v959 = vrot.slane %v382, %v958
        %v960 = vlaneseq
        %v961 = vshrl.u32 %v960, 7
        %v962 = vsub.s32 0, %v961
        %v963 = vrot.slane %v383, %v962
        %v964 = vlaneseq
        %v965 = vshrl.u32 %v964, 7
        %v966 = vsub.s32 0, %v965
        %v967 = vrot.slane %v384, %v966
        %v968 = vlaneseq
        %v969 = vshrl.u32 %v968, 7
        %v970 = vsub.s32 0, %v969
        %v971 = vrot.slane %v385, %v970
        %v972 = vlaneseq
        %v973 = vshrl.u32 %v972, 7
        %v974 = vsub.s32 0, %v973
        %v975 = vrot.slane %v386, %v974
        %v976 = vlaneseq
        %v977 = vshrl.u32 %v976, 7
        %v978 = vsub.s32 0, %v977
        %v979 = vrot.slane %v387, %v978
        %980 = vset.pattern.permute.xlu0 0
        %981 = vperm.xlu0 %980, %v951
        %v982 = vpop.permute.xlu0 %981
        %984 = vset.pattern.permute.xlu0 0
        %985 = vperm.xlu0 %984, %v955
        %v986 = vpop.permute.xlu0 %985
        %988 = vset.pattern.permute.xlu0 0
        %989 = vperm.xlu0 %988, %v959
        %v990 = vpop.permute.xlu0 %989
        %992 = vset.pattern.permute.xlu0 0
        %993 = vperm.xlu0 %992, %v963
        %v994 = vpop.permute.xlu0 %993
        %996 = vset.pattern.permute.xlu0 0
        %997 = vperm.xlu0 %996, %v967
        %v998 = vpop.permute.xlu0 %997
        %1000 = vset.pattern.permute.xlu0 0
        %1001 = vperm.xlu0 %1000, %v971
        %v1002 = vpop.permute.xlu0 %1001
        %1004 = vset.pattern.permute.xlu0 0
        %1005 = vperm.xlu0 %1004, %v975
        %v1006 = vpop.permute.xlu0 %1005
        %1008 = vset.pattern.permute.xlu0 0
        %1009 = vperm.xlu0 %1008, %v979
        %v1010 = vpop.permute.xlu0 %1009
        %v1012 = vadd.f32 %v932, %v982
        %v1013 = vadd.f32 %v933, %v986
        %v1014 = vadd.f32 %v934, %v990
        %v1015 = vadd.f32 %v935, %v994
        %v1016 = vadd.f32 %v936, %v998
        %v1017 = vadd.f32 %v937, %v1002
        %v1018 = vadd.f32 %v938, %v1006
        %v1019 = vadd.f32 %v939, %v1010
        %1021 = vrot.lane.b32.xlu0 %v853, 16
        %v1022 = vpop.permute.xlu0 %1021
        %1025 = vrot.lane.b32.xlu0 %v854, 32
        %v1026 = vpop.permute.xlu0 %1025
        %1029 = vrot.lane.b32.xlu0 %v855, 48
        %v1030 = vpop.permute.xlu0 %1029
        %vm1032 = vcmask 130048
        %v1033 = vsel %vm1032, %v852, %v1022
        %vm1034 = vcmask 261120
        %v1035 = vsel %vm1034, %v1033, %v1026
        %vm1036 = vcmask 392192
        %v1037 = vsel %vm1036, %v1035, %v1030
        %1039 = vrot.lane.b32.xlu0 %v857, 16
        %v1040 = vpop.permute.xlu0 %1039
        %1043 = vrot.lane.b32.xlu0 %v858, 32
        %v1044 = vpop.permute.xlu0 %1043
        %1047 = vrot.lane.b32.xlu0 %v859, 48
        %v1048 = vpop.permute.xlu0 %1047
        %v1050 = vsel %vm1032, %v856, %v1040
        %v1051 = vsel %vm1034, %v1050, %v1044
        %v1052 = vsel %vm1036, %v1051, %v1048
        %1054 = vrot.lane.b32.xlu0 %v1013, 16
        %v1055 = vpop.permute.xlu0 %1054
        %1058 = vrot.lane.b32.xlu0 %v1014, 32
        %v1059 = vpop.permute.xlu0 %1058
        %1062 = vrot.lane.b32.xlu0 %v1015, 48
        %v1063 = vpop.permute.xlu0 %1062
        %v1065 = vsel %vm1032, %v1012, %v1055
        %v1066 = vsel %vm1034, %v1065, %v1059
        %v1067 = vsel %vm1036, %v1066, %v1063
        %1069 = vrot.lane.b32.xlu0 %v1017, 16
        %v1070 = vpop.permute.xlu0 %1069
        %1073 = vrot.lane.b32.xlu0 %v1018, 32
        %v1074 = vpop.permute.xlu0 %1073
        %1077 = vrot.lane.b32.xlu0 %v1019, 48
        %v1078 = vpop.permute.xlu0 %1077
        %v1080 = vsel %vm1032, %v1016, %v1070
        %v1081 = vsel %vm1034, %v1080, %v1074
        %v1082 = vsel %vm1036, %v1081, %v1078
        %v1083 = vlaneseq
        %v1084 = vand.u32 %v1083, 127
        %v1085 = vand.u32 %v1084, 31
        %vm1086 = vcmp.ge.s32.totalorder %v1085, 8
        %vm1087 = vcmp.lt.s32.totalorder %v1085, 16
        %vm1088 = vmand %vm1086, %vm1087
        %vm1089 = vcmp.ge.s32.totalorder %v1085, 16
        %vm1090 = vcmp.lt.s32.totalorder %v1085, 24
        %vm1091 = vmand %vm1089, %vm1090
        %1096 = vrot.lane.b32.xlu0 %v1037, 120
        %v1097 = vpop.permute.xlu0 %1096
        %1098 = vrot.lane.b32.xlu0 %v1052, 120
        %v1099 = vpop.permute.xlu0 %1098
        %1100 = vrot.lane.b32.xlu0 %v1067, 120
        %v1101 = vpop.permute.xlu0 %1100
        %1102 = vrot.lane.b32.xlu0 %v1082, 120
        %v1103 = vpop.permute.xlu0 %1102
        %1108 = vrot.lane.b32.xlu0 %v1037, 56
        %v1109 = vpop.permute.xlu0 %1108
        %1110 = vrot.lane.b32.xlu0 %v1052, 56
        %v1111 = vpop.permute.xlu0 %1110
        %1112 = vrot.lane.b32.xlu0 %v1067, 56
        %v1113 = vpop.permute.xlu0 %1112
        %1114 = vrot.lane.b32.xlu0 %v1082, 56
        %v1115 = vpop.permute.xlu0 %1114
        %vm1120 = vcmask 457728
        %v1121 = vsel %vm1120, %v1097, %v1109
        %v1122 = vsel %vm1120, %v1099, %v1111
        %v1123 = vsel %vm1120, %v1101, %v1113
        %v1124 = vsel %vm1120, %v1103, %v1115
        %1125 = vrot.lane.b32.xlu0 %v1037, 72
        %v1126 = vpop.permute.xlu0 %1125
        %1127 = vrot.lane.b32.xlu0 %v1052, 72
        %v1128 = vpop.permute.xlu0 %1127
        %1129 = vrot.lane.b32.xlu0 %v1067, 72
        %v1130 = vpop.permute.xlu0 %1129
        %1131 = vrot.lane.b32.xlu0 %v1082, 72
        %v1132 = vpop.permute.xlu0 %1131
        %1137 = vrot.lane.b32.xlu0 %v1037, 8
        %v1138 = vpop.permute.xlu0 %1137
        %1139 = vrot.lane.b32.xlu0 %v1052, 8
        %v1140 = vpop.permute.xlu0 %1139
        %1141 = vrot.lane.b32.xlu0 %v1067, 8
        %v1142 = vpop.permute.xlu0 %1141
        %1143 = vrot.lane.b32.xlu0 %v1082, 8
        %v1144 = vpop.permute.xlu0 %1143
        %vm1149 = vcmask 64512
        %v1150 = vsel %vm1149, %v1126, %v1138
        %v1151 = vsel %vm1149, %v1128, %v1140
        %v1152 = vsel %vm1149, %v1130, %v1142
        %v1153 = vsel %vm1149, %v1132, %v1144
        %v1154 = vsel %vm1091, 1, 0
        %vm1155 = vcmp.eq.s32.totalorder %v1154, 1
        %v1156 = vsel %vm1155, %v1150, %v1037
        %v1157 = vsel %vm1155, %v1151, %v1052
        %v1158 = vsel %vm1155, %v1152, %v1067
        %v1159 = vsel %vm1155, %v1153, %v1082
        %v1160 = vsel %vm1088, 1, 0
        %vm1161 = vcmp.eq.s32.totalorder %v1160, 1
        %v1162 = vsel %vm1161, %v1121, %v1156
        %v1163 = vsel %vm1161, %v1122, %v1157
        %v1164 = vsel %vm1161, %v1123, %v1158
        %v1165 = vsel %vm1161, %v1124, %v1159
        %v1166 = vand.u32 %v1084, 15
        %vm1167 = vcmp.ge.s32.totalorder %v1166, 4
        %vm1168 = vcmp.lt.s32.totalorder %v1166, 8
        %vm1169 = vmand %vm1167, %vm1168
        %vm1170 = vcmp.ge.s32.totalorder %v1166, 8
        %vm1171 = vcmp.lt.s32.totalorder %v1166, 12
        %vm1172 = vmand %vm1170, %vm1171
        %1177 = vrot.lane.b32.xlu0 %v1162, 124
        %v1178 = vpop.permute.xlu0 %1177
        %1179 = vrot.lane.b32.xlu0 %v1163, 124
        %v1180 = vpop.permute.xlu0 %1179
        %1181 = vrot.lane.b32.xlu0 %v1164, 124
        %v1182 = vpop.permute.xlu0 %1181
        %1183 = vrot.lane.b32.xlu0 %v1165, 124
        %v1184 = vpop.permute.xlu0 %1183
        %1189 = vrot.lane.b32.xlu0 %v1162, 60
        %v1190 = vpop.permute.xlu0 %1189
        %1191 = vrot.lane.b32.xlu0 %v1163, 60
        %v1192 = vpop.permute.xlu0 %1191
        %1193 = vrot.lane.b32.xlu0 %v1164, 60
        %v1194 = vpop.permute.xlu0 %1193
        %1195 = vrot.lane.b32.xlu0 %v1165, 60
        %v1196 = vpop.permute.xlu0 %1195
        %vm1201 = vcmask 490496
        %v1202 = vsel %vm1201, %v1178, %v1190
        %v1203 = vsel %vm1201, %v1180, %v1192
        %v1204 = vsel %vm1201, %v1182, %v1194
        %v1205 = vsel %vm1201, %v1184, %v1196
        %1206 = vrot.lane.b32.xlu0 %v1162, 68
        %v1207 = vpop.permute.xlu0 %1206
        %1208 = vrot.lane.b32.xlu0 %v1163, 68
        %v1209 = vpop.permute.xlu0 %1208
        %1210 = vrot.lane.b32.xlu0 %v1164, 68
        %v1211 = vpop.permute.xlu0 %1210
        %1212 = vrot.lane.b32.xlu0 %v1165, 68
        %v1213 = vpop.permute.xlu0 %1212
        %1218 = vrot.lane.b32.xlu0 %v1162, 4
        %v1219 = vpop.permute.xlu0 %1218
        %1220 = vrot.lane.b32.xlu0 %v1163, 4
        %v1221 = vpop.permute.xlu0 %1220
        %1222 = vrot.lane.b32.xlu0 %v1164, 4
        %v1223 = vpop.permute.xlu0 %1222
        %1224 = vrot.lane.b32.xlu0 %v1165, 4
        %v1225 = vpop.permute.xlu0 %1224
        %vm1230 = vcmask 31744
        %v1231 = vsel %vm1230, %v1207, %v1219
        %v1232 = vsel %vm1230, %v1209, %v1221
        %v1233 = vsel %vm1230, %v1211, %v1223
        %v1234 = vsel %vm1230, %v1213, %v1225
        %v1235 = vsel %vm1172, 1, 0
        %vm1236 = vcmp.eq.s32.totalorder %v1235, 1
        %v1237 = vsel %vm1236, %v1231, %v1162
        %v1238 = vsel %vm1236, %v1232, %v1163
        %v1239 = vsel %vm1236, %v1233, %v1164
        %v1240 = vsel %vm1236, %v1234, %v1165
        %v1241 = vsel %vm1169, 1, 0
        %vm1242 = vcmp.eq.s32.totalorder %v1241, 1
        %v1243 = vsel %vm1242, %v1202, %v1237
        %v1244 = vsel %vm1242, %v1203, %v1238
        %v1245 = vsel %vm1242, %v1204, %v1239
        %v1246 = vsel %vm1242, %v1205, %v1240
        %v1247 = vand.u32 %v1084, 7
        %vm1248 = vcmp.ge.s32.totalorder %v1247, 2
        %vm1249 = vcmp.lt.s32.totalorder %v1247, 4
        %vm1250 = vmand %vm1248, %vm1249
        %vm1251 = vcmp.ge.s32.totalorder %v1247, 4
        %vm1252 = vcmp.lt.s32.totalorder %v1247, 6
        %vm1253 = vmand %vm1251, %vm1252
        %1258 = vrot.lane.b32.xlu0 %v1243, 126
        %v1259 = vpop.permute.xlu0 %1258
        %1260 = vrot.lane.b32.xlu0 %v1244, 126
        %v1261 = vpop.permute.xlu0 %1260
        %1262 = vrot.lane.b32.xlu0 %v1245, 126
        %v1263 = vpop.permute.xlu0 %1262
        %1264 = vrot.lane.b32.xlu0 %v1246, 126
        %v1265 = vpop.permute.xlu0 %1264
        %1270 = vrot.lane.b32.xlu0 %v1243, 62
        %v1271 = vpop.permute.xlu0 %1270
        %1272 = vrot.lane.b32.xlu0 %v1244, 62
        %v1273 = vpop.permute.xlu0 %1272
        %1274 = vrot.lane.b32.xlu0 %v1245, 62
        %v1275 = vpop.permute.xlu0 %1274
        %1276 = vrot.lane.b32.xlu0 %v1246, 62
        %v1277 = vpop.permute.xlu0 %1276
        %vm1282 = vcmask 506880
        %v1283 = vsel %vm1282, %v1259, %v1271
        %v1284 = vsel %vm1282, %v1261, %v1273
        %v1285 = vsel %vm1282, %v1263, %v1275
        %v1286 = vsel %vm1282, %v1265, %v1277
        %1287 = vrot.lane.b32.xlu0 %v1243, 66
        %v1288 = vpop.permute.xlu0 %1287
        %1289 = vrot.lane.b32.xlu0 %v1244, 66
        %v1290 = vpop.permute.xlu0 %1289
        %1291 = vrot.lane.b32.xlu0 %v1245, 66
        %v1292 = vpop.permute.xlu0 %1291
        %1293 = vrot.lane.b32.xlu0 %v1246, 66
        %v1294 = vpop.permute.xlu0 %1293
        %1299 = vrot.lane.b32.xlu0 %v1243, 2
        %v1300 = vpop.permute.xlu0 %1299
        %1301 = vrot.lane.b32.xlu0 %v1244, 2
        %v1302 = vpop.permute.xlu0 %1301
        %1303 = vrot.lane.b32.xlu0 %v1245, 2
        %v1304 = vpop.permute.xlu0 %1303
        %1305 = vrot.lane.b32.xlu0 %v1246, 2
        %v1306 = vpop.permute.xlu0 %1305
        %vm1311 = vcmask 15360
        %v1312 = vsel %vm1311, %v1288, %v1300
        %v1313 = vsel %vm1311, %v1290, %v1302
        %v1314 = vsel %vm1311, %v1292, %v1304
        %v1315 = vsel %vm1311, %v1294, %v1306
        %v1316 = vsel %vm1253, 1, 0
        %vm1317 = vcmp.eq.s32.totalorder %v1316, 1
        %v1318 = vsel %vm1317, %v1312, %v1243
        %v1319 = vsel %vm1317, %v1313, %v1244
        %v1320 = vsel %vm1317, %v1314, %v1245
        %v1321 = vsel %vm1317, %v1315, %v1246
        %v1322 = vsel %vm1250, 1, 0
        %vm1323 = vcmp.eq.s32.totalorder %v1322, 1
        %v1324 = vsel %vm1323, %v1283, %v1318
        %v1325 = vsel %vm1323, %v1284, %v1319
        %v1326 = vsel %vm1323, %v1285, %v1320
        %v1327 = vsel %vm1323, %v1286, %v1321
        %v1328 = vand.u32 %v1084, 3
        %vm1329 = vcmp.ge.s32.totalorder %v1328, 1
        %vm1330 = vcmp.lt.s32.totalorder %v1328, 2
        %vm1331 = vmand %vm1329, %vm1330
        %vm1332 = vcmp.ge.s32.totalorder %v1328, 2
        %vm1333 = vcmp.lt.s32.totalorder %v1328, 3
        %vm1334 = vmand %vm1332, %vm1333
        %1339 = vrot.lane.b32.xlu0 %v1324, 127
        %v1340 = vpop.permute.xlu0 %1339
        %1341 = vrot.lane.b32.xlu0 %v1325, 127
        %v1342 = vpop.permute.xlu0 %1341
        %1343 = vrot.lane.b32.xlu0 %v1326, 127
        %v1344 = vpop.permute.xlu0 %1343
        %1345 = vrot.lane.b32.xlu0 %v1327, 127
        %v1346 = vpop.permute.xlu0 %1345
        %1351 = vrot.lane.b32.xlu0 %v1324, 63
        %v1352 = vpop.permute.xlu0 %1351
        %1353 = vrot.lane.b32.xlu0 %v1325, 63
        %v1354 = vpop.permute.xlu0 %1353
        %1355 = vrot.lane.b32.xlu0 %v1326, 63
        %v1356 = vpop.permute.xlu0 %1355
        %1357 = vrot.lane.b32.xlu0 %v1327, 63
        %v1358 = vpop.permute.xlu0 %1357
        %vm1363 = vcmask 515072
        %v1364 = vsel %vm1363, %v1340, %v1352
        %v1365 = vsel %vm1363, %v1342, %v1354
        %v1366 = vsel %vm1363, %v1344, %v1356
        %v1367 = vsel %vm1363, %v1346, %v1358
        %1368 = vrot.lane.b32.xlu0 %v1324, 65
        %v1369 = vpop.permute.xlu0 %1368
        %1370 = vrot.lane.b32.xlu0 %v1325, 65
        %v1371 = vpop.permute.xlu0 %1370
        %1372 = vrot.lane.b32.xlu0 %v1326, 65
        %v1373 = vpop.permute.xlu0 %1372
        %1374 = vrot.lane.b32.xlu0 %v1327, 65
        %v1375 = vpop.permute.xlu0 %1374
        %1380 = vrot.lane.b32.xlu0 %v1324, 1
        %v1381 = vpop.permute.xlu0 %1380
        %1382 = vrot.lane.b32.xlu0 %v1325, 1
        %v1383 = vpop.permute.xlu0 %1382
        %1384 = vrot.lane.b32.xlu0 %v1326, 1
        %v1385 = vpop.permute.xlu0 %1384
        %1386 = vrot.lane.b32.xlu0 %v1327, 1
        %v1387 = vpop.permute.xlu0 %1386
        %vm1392 = vcmask 7168
        %v1393 = vsel %vm1392, %v1369, %v1381
        %v1394 = vsel %vm1392, %v1371, %v1383
        %v1395 = vsel %vm1392, %v1373, %v1385
        %v1396 = vsel %vm1392, %v1375, %v1387
        %v1397 = vsel %vm1334, 1, 0
        %vm1398 = vcmp.eq.s32.totalorder %v1397, 1
        %v1399 = vsel %vm1398, %v1393, %v1324
        %v1400 = vsel %vm1398, %v1394, %v1325
        %v1401 = vsel %vm1398, %v1395, %v1326
        %v1402 = vsel %vm1398, %v1396, %v1327
        %v1403 = vsel %vm1331, 1, 0
        %vm1404 = vcmp.eq.s32.totalorder %v1403, 1
        %v1405 = vsel %vm1404, %v1364, %v1399
        %v1406 = vsel %vm1404, %v1365, %v1400
        %v1407 = vsel %vm1404, %v1366, %v1401
        %v1408 = vsel %vm1404, %v1367, %v1402
        %vm1409 = vcmask 523264
        %1410 = vst.msk [vmem:[%s351] sm:$0xff] %vm1409, %v1405
        %1411 = vst.msk [vmem:[%s351 + $0x8] sm:$0xff] %vm1409, %v1406
        %1412 = vst.msk [vmem:[%s351 + $0x10] sm:$0xff] %vm1409, %v1407
        %1413 = vst.msk [vmem:[%s351 + $0x18] sm:$0xff] %vm1409, %v1408
        %s1414 = sand.u32 %s195, 1
        %s1415 = sand.u32 %s195, 1
        %s1416 = smul.addr %s1415, 32
        %s1417 = scalar_lea.vmem [#allocation6], %s1416
        // Predicated region
        $region53: #{dinv_block_forward.1} parent=43 // pred_check
          %p1418 = pneg %p205
        $region54: #{dinv_block_forward.1} parent=43 // pred_check_branch
          %1420 = sbr.rel (%p1418) target = $region56
        $region55: #{dinv_block_forward.1} parent=43 // pred_region
          %s1421 = smul.addr %s27, 8
          %s1422 = sadd.s32 %s28, %s1421
          %s1423 = smul.addr %s1422, 8
          %s1424 = scalar_lea.vmem %s6, %s1423
          // Predicated region
          $region57: #{dinv_block_forward.1} parent=55 // pred_check
            _
          $region58: #{dinv_block_forward.1} parent=55 // pred_check_branch
            %1426 = sbr.rel (0) target = $region60
          $region59: #{dinv_block_forward.1} parent=55 // pred_region
            // Predicated region
            $region61: #{dinv_block_forward.1} parent=59 // pred_check
              _
            $region62: #{dinv_block_forward.1} parent=59 // pred_check_branch
              %1428 = sbr.rel (0) target = $region64
            $region63: #{dinv_block_forward.1} parent=59 // pred_region
              // Predicated region
              $region76: #{dinv_block_forward.1} parent=63 // pred_check
                _
              $region77: #{dinv_block_forward.1} parent=63 // pred_check_branch
                %1450 = sbr.rel (0) target = $region79
              $region78: #{dinv_block_forward.1} parent=63 // pred_region
                loop: start=0, step=1, limit=1
                $region80: #{dinv_block_forward.1} parent=78 // loop_pre_header
                  _
                $region81: #{dinv_block_forward.1} parent=78 // loop_header
                  %s1452 = sphi 0, %s1456
                  %p1453 = scmp.ge.s32.totalorder %s1452, 1
                  %s1457 = sphi %s1417, %s1417
                  %s1458 = sphi %s1424, %s1424
                $region82: #{dinv_block_forward.1} parent=78 // loop_header_branch
                  %1455 = sbr.rel (%p1453) target = $region86
                $region83: #{dinv_block_forward.1} parent=78 // loop_body
                  %v1459 = vld [vmem:[%s1457] sm:$0xff]
                  %1460 = vst [vmem:[%s1458] sm:$0xff] %v1459
                  %v1461 = vld [vmem:[%s1457 + $0x8] sm:$0xff]
                  %1462 = vst [vmem:[%s1458 + $0x10] sm:$0xff] %v1461
                  %v1463 = vld [vmem:[%s1457 + $0x10] sm:$0xff]
                  %1464 = vst [vmem:[%s1458 + $0x20] sm:$0xff] %v1463
                  %v1465 = vld [vmem:[%s1457 + $0x18] sm:$0xff]
                  %1466 = vst [vmem:[%s1458 + $0x30] sm:$0xff] %v1465
                $region84: #{dinv_block_forward.1} parent=78 // loop_footer
                  %s1456 = sadd.s32 1, %s1452
                $region85: #{dinv_block_forward.1} parent=78 // loop_footer_branch
                  %1451 = sbr.rel target = $region81
                $region86: #{dinv_block_forward.1} parent=78 // loop_exit
                  _
              $region79: #{dinv_block_forward.1} parent=63 // pred_fallthru
                _
              // Predicated region
              $region87: #{dinv_block_forward.1} parent=63 // pred_check
                _
              $region88: #{dinv_block_forward.1} parent=63 // pred_check_branch
                %1468 = sbr.rel target = $region90
              $region89: #{dinv_block_forward.1} parent=63 // pred_region
                _
              $region90: #{dinv_block_forward.1} parent=63 // pred_fallthru
                _
            $region64: #{dinv_block_forward.1} parent=59 // pred_fallthru
              _
            // Predicated region
            $region65: #{dinv_block_forward.1} parent=59 // pred_check
              _
            $region66: #{dinv_block_forward.1} parent=59 // pred_check_branch
              %1430 = sbr.rel target = $region68
            $region67: #{dinv_block_forward.1} parent=59 // pred_region
              %s1432 = ssub.s32 256, 1
              loop: start=0, step=1, limit=1
              $region69: #{dinv_block_forward.1} parent=67 // loop_pre_header
                _
              $region70: #{dinv_block_forward.1} parent=67 // loop_header
                %s1434 = sphi 0, %s1438
                %p1435 = scmp.ge.s32.totalorder %s1434, 1
                %s1439 = sphi %s1417, %s1417
                %s1440 = sphi %s1424, %s1424
              $region71: #{dinv_block_forward.1} parent=67 // loop_header_branch
                %1437 = sbr.rel (%p1435) target = $region75
              $region72: #{dinv_block_forward.1} parent=67 // loop_body
                %v1441 = vld [vmem:[%s1439] sm:%s1432]
                %1442 = vst [vmem:[%s1440] sm:%s1432] %v1441
                %v1443 = vld [vmem:[%s1439 + $0x8] sm:%s1432]
                %1444 = vst [vmem:[%s1440 + $0x10] sm:%s1432] %v1443
                %v1445 = vld [vmem:[%s1439 + $0x10] sm:%s1432]
                %1446 = vst [vmem:[%s1440 + $0x20] sm:%s1432] %v1445
                %v1447 = vld [vmem:[%s1439 + $0x18] sm:%s1432]
                %1448 = vst [vmem:[%s1440 + $0x30] sm:%s1432] %v1447
              $region73: #{dinv_block_forward.1} parent=67 // loop_footer
                %s1438 = sadd.s32 1, %s1434
              $region74: #{dinv_block_forward.1} parent=67 // loop_footer_branch
                %1433 = sbr.rel target = $region70
              $region75: #{dinv_block_forward.1} parent=67 // loop_exit
                _
            $region68: #{dinv_block_forward.1} parent=59 // pred_fallthru
              _
          $region60: #{dinv_block_forward.1} parent=55 // pred_fallthru
            _
          %1469 = vnop
        $region56: #{dinv_block_forward.1} parent=43 // pred_fallthru
          _
      $region44: #{dinv_block_forward.1} parent=5 // pred_fallthru
        _
      %p1470 = scmp.le.s32.totalorder 2, %s18
      // Predicated region
      $region91: #{dinv_block_forward.1} parent=5 // pred_check
        %p1471 = pneg %p1470
      $region92: #{dinv_block_forward.1} parent=5 // pred_check_branch
        %1473 = sbr.rel (%p1471) target = $region94
      $region93: #{dinv_block_forward.1} parent=5 // pred_region
        %s1474 = ssub.s32 %s18, 2
        // Predicated region
        $region95: #{dinv_block_forward.1} parent=93 // pred_check
          %p1475 = pneg %p211
        $region96: #{dinv_block_forward.1} parent=93 // pred_check_branch
          %1477 = sbr.rel (%p1475) target = $region98
        $region97: #{dinv_block_forward.1} parent=93 // pred_region
          %s1478 = sand.u32 %s196, 1
          %s1479 = sand.u32 %s196, 1
          %s1480 = smul.addr %s1479, 32
          %s1481 = scalar_lea.vmem [#allocation6], %s1480
        $region98: #{dinv_block_forward.1} parent=93 // pred_fallthru
          _
      $region94: #{dinv_block_forward.1} parent=5 // pred_fallthru
        _
    $region6: #{dinv_block_forward.1} parent=1 // loop_footer
      %s22 = sadd.s32 1, %s18
    $region7: #{dinv_block_forward.1} parent=1 // loop_footer_branch
      %17 = sbr.rel target = $region3
    $region8: #{dinv_block_forward.1} parent=1 // loop_exit
      _
    %1482 = vsyncpa [#allocation3], 1
    %s1483 = scalar_lea.sflag [#allocation3], 1
    %1484 = vsyncpa %s1483, 1
    %1485 = vsyncpa [#allocation5], 1
    %s1486 = scalar_lea.sflag [#allocation5], 1
    %1487 = vsyncpa %s1486, 1

</llo_original>
